<compile_context>
chip_gen: v7x
topology: tpu7x:2x2x1
jax: 0.10.0
libtpu: 0.0.40
codegen_flags: <defaults>
</compile_context>

<pallas_src>
import math

import jax
import jax.numpy as jnp
from jax.experimental import pallas as pl
from jax.experimental.pallas import tpu as pltpu

HIDDEN = 32      # hidden_size
MEMORY = 10      # memory_size == LSTMCell hidden size
COMM = 4         # comm_size   == LSTMCell input size
COMM_STEPS = 2   # comm_steps

_ROWS_TARGET = 512   # target rows (samples * agents) per grid step
_OUT_LANES = 128     # lane-dense padded width of the final projection


def _commnet_kernel(x_ref,
                    w1, w2, w3, wc1, wf, whh, wo1x, wo1h, wo2, wo3p,
                    bias_ref,
                    out_ref):
    f32 = jnp.float32
    N, TB, F = x_ref.shape               # agent-major tile: N agents, TB samples
    x = x_ref[...].reshape(N * TB, F)    # leading-dim merge (TB % 8 == 0) -> free

    # ---- biases: one (8, 128) slab, loaded once per tile ---------------------
    b1 = bias_ref[0:1, :HIDDEN]
    b2 = bias_ref[1:2, :HIDDEN]
    b3 = bias_ref[2:3, :MEMORY]
    bc1 = bias_ref[3:4, :HIDDEN]
    bcomb = bias_ref[4:5, :4 * MEMORY]   # bc2 @ wih + bih + bhh
    bo1 = bias_ref[5:6, :HIDDEN]
    bo2 = bias_ref[6:7, :HIDDEN]
    bo3 = bias_ref[7:8, :]               # padded to 128 lanes

    # ---- input MLP -> initial LSTM hidden state ------------------------------
    h = jnp.tanh(jnp.dot(x, w1[...], preferred_element_type=f32) + b1)
    h = jnp.tanh(jnp.dot(h, w2[...], preferred_element_type=f32) + b2)
    hid = jnp.dot(h, w3[...], preferred_element_type=f32) + b3    # (N*TB, MEMORY)
    cell = jnp.zeros_like(hid)

    # ---- communication steps (statically unrolled, COMM_STEPS=2) ------------
    # NOTE: for N == 1 this is 0/0 -> NaN, matching PyTorch's divide-by-zero.
    inv = (1.0 / (N - 1)) if N > 1 else float("nan")
    wc1_v = wc1[...]
    wf_v = wf[...]
    whh_v = whh[...]
    for _ in range(COMM_STEPS):
        # comm MLP first layer; wc2 is folded into wf = wc2 @ wih (mixing is linear)
        h1 = jnp.tanh(jnp.dot(hid, wc1_v, preferred_element_type=f32) + bc1)
        # per-sample "(sum of others)/(N-1)": sum over the leading agent axis
        # (N-1 VPU adds) + broadcast subtract -- no mixing matmul needed.
        h1_3d = h1.reshape(N, TB, HIDDEN)
        total = jnp.sum(h1_3d, axis=0, keepdims=True)              # (1, TB, HIDDEN)
        h1m = ((total - h1_3d) * inv).reshape(N * TB, HIDDEN)
        gates = (jnp.dot(h1m, wf_v, preferred_element_type=f32)
                 + jnp.dot(hid, whh_v, preferred_element_type=f32)
                 + bcomb)                                          # (N*TB, 4*MEMORY)
        # full-width nonlinearities, then lane-slice (PyTorch gate order i,f,g,o)
        sg = jax.nn.sigmoid(gates)
        tg = jnp.tanh(gates)
        i_g = sg[:, 0 * MEMORY:1 * MEMORY]
        f_g = sg[:, 1 * MEMORY:2 * MEMORY]
        g_g = tg[:, 2 * MEMORY:3 * MEMORY]
        o_g = sg[:, 3 * MEMORY:4 * MEMORY]
        cell = f_g * cell + i_g * g_g
        hid = o_g * jnp.tanh(cell)

    # ---- output MLP with skip connection (concat replaced by split matmuls) --
    y = jnp.tanh(jnp.dot(x, wo1x[...], preferred_element_type=f32)
                 + jnp.dot(hid, wo1h[...], preferred_element_type=f32) + bo1)
    y = jnp.tanh(jnp.dot(y, wo2[...], preferred_element_type=f32) + bo2)
    # lane-padded final projection -> unmasked 128-lane stores
    y = jnp.tanh(jnp.dot(y, wo3p[...], preferred_element_type=f32) + bo3)
    out_ref[...] = y.reshape(N, TB, _OUT_LANES)


def _prep_params(params, input_size):
    """Fold / split / pad the PyTorch-style params for the kernel."""
    F = input_size
    wf = params["wc2"] @ params["wih"]                               # (HIDDEN, 4*MEMORY)
    bcomb = params["bc2"] @ params["wih"] + params["bih"] + params["bhh"]
    wo1x = params["wo1"][:F, :]
    wo1h = params["wo1"][F:, :]
    wo3p = jnp.zeros((HIDDEN, _OUT_LANES), jnp.float32).at[:, :1].set(params["wo3"])

    def padrow(b):
        b = jnp.asarray(b, jnp.float32).reshape(1, -1)
        return jnp.zeros((1, _OUT_LANES), jnp.float32).at[:, :b.shape[1]].set(b)

    bias = jnp.concatenate([
        padrow(params["b1"]), padrow(params["b2"]), padrow(params["b3"]),
        padrow(params["bc1"]), padrow(bcomb),
        padrow(params["bo1"]), padrow(params["bo2"]), padrow(params["bo3"]),
    ], axis=0)                                                       # (8, 128)

    weights = [params["w1"], params["w2"], params["w3"], params["wc1"],
               wf, params["whh"], wo1x, wo1h, params["wo2"], wo3p]
    return weights, bias


def commnet_forward(x, params):
    """Returns (mean, std) replicating ContinuousCommNet.forward's Normal(mean, std)."""
    if x.ndim == 2:                       # matches torch.unsqueeze(x, 0)
        x = x[None]
    B, N, F = x.shape

    # TB samples per grid step (multiple of 8 sublanes); rows per tile = N * TB.
    tb = max(8, min(_ROWS_TARGET // max(N, 1), ((B + 7) // 8) * 8))
    tb = ((tb + 7) // 8) * 8
    b_pad = ((B + tb - 1) // tb) * tb
    num_tiles = b_pad // tb

    # agent-major layout (N, B_pad, F): cross-agent mixing becomes a cheap
    # leading-axis sum inside the kernel; batch-tail padded with zeros.
    xt = jnp.transpose(x.astype(jnp.float32), (1, 0, 2))
    if b_pad != B:
        xt = jnp.concatenate(
            [xt, jnp.zeros((N, b_pad - B, F), jnp.float32)], axis=1)

    weights, bias = _prep_params(params, F)

    in_specs = [pl.BlockSpec((N, tb, F), lambda i: (0, i, 0))]
    for w in weights:
        in_specs.append(pl.BlockSpec(w.shape, lambda i: (0, 0)))
    in_specs.append(pl.BlockSpec(bias.shape, lambda i: (0, 0)))
    out_spec = pl.BlockSpec((N, tb, _OUT_LANES), lambda i: (0, i, 0))

    out = pl.pallas_call(
        _commnet_kernel,
        out_shape=jax.ShapeDtypeStruct((N, b_pad, _OUT_LANES), jnp.float32),
        grid_spec=pltpu.PrefetchScalarGridSpec(
            num_scalar_prefetch=0,
            grid=(num_tiles,),
            in_specs=in_specs,
            out_specs=out_spec),
        compiler_params=pltpu.CompilerParams(
            dimension_semantics=("parallel",)),
    )(xt, *weights, bias)

    mean = jnp.transpose(out[:, :B, 0], (1, 0)).reshape(B, N, 1)
    std = jnp.exp(params["actor_logstd"])
    # TODO(synk): torch.distributions.Normal has no Pallas equivalent; we
    # return its (mean, std) parameters instead.
    return mean, std


# --------------------------- parameter construction ---------------------------
def init_params(key, input_size, hidden=HIDDEN, memory=MEMORY, comm=COMM):
    """Deterministic PyTorch-style (U(-1/sqrt(fan_in), 1/sqrt(fan_in))) init.
    Linear weights are stored transposed to (in, out); biases as (1, out)."""
    def linear(k, fan_in, fan_out):
        k1, k2 = jax.random.split(k)
        bound = 1.0 / (fan_in ** 0.5)
        w = jax.random.uniform(k1, (fan_in, fan_out), jnp.float32, -bound, bound)
        b = jax.random.uniform(k2, (1, fan_out), jnp.float32, -bound, bound)
        return w, b

    ks = jax.random.split(key, 11)
    p = {}
    # _in_mlp: F -> hidden -> hidden -> memory
    p["w1"], p["b1"] = linear(ks[0], input_size, hidden)
    p["w2"], p["b2"] = linear(ks[1], hidden, hidden)
    p["w3"], p["b3"] = linear(ks[2], hidden, memory)
    # _comm_mlp: memory -> hidden -> comm
    p["wc1"], p["bc1"] = linear(ks[3], memory, hidden)
    p["wc2"], p["bc2"] = linear(ks[4], hidden, comm)
    # _lstm: LSTMCell(input=comm, hidden=memory); PyTorch init bound = 1/sqrt(hidden)
    bound = 1.0 / (memory ** 0.5)
    p["wih"] = jax.random.uniform(ks[5], (comm, 4 * memory), jnp.float32, -bound, bound)
    p["whh"] = jax.random.uniform(ks[6], (memory, 4 * memory), jnp.float32, -bound, bound)
    p["bih"] = jax.random.uniform(ks[7], (1, 4 * memory), jnp.float32, -bound, bound)
    p["bhh"] = jax.random.uniform(ks[8], (1, 4 * memory), jnp.float32, -bound, bound)
    # _out_mlp: (F + memory) -> hidden -> hidden -> 1
    p["wo1"], p["bo1"] = linear(ks[9], input_size + memory, hidden)
    k10a, k10b = jax.random.split(ks[10])
    p["wo2"], p["bo2"] = linear(k10a, hidden, hidden)
    p["wo3"], p["bo3"] = linear(k10b, hidden, 1)
    # actor_logstd = zeros(1)
    p["actor_logstd"] = jnp.zeros((1,), jnp.float32)
    return p


# --------------------------- pure-JAX reference (for checking) ----------------
def commnet_ref(x, p):
    B, N, F = x.shape
    r = x.reshape(B * N, F)
    h = jnp.tanh(r @ p["w1"] + p["b1"])
    h = jnp.tanh(h @ p["w2"] + p["b2"])
    hid = h @ p["w3"] + p["b3"]
    cell = jnp.zeros_like(hid)
    for _ in range(COMM_STEPS):
        c = jnp.tanh(hid @ p["wc1"] + p["bc1"]) @ p["wc2"] + p["bc2"]
        c = c.reshape(B, N, COMM)
        c = (jnp.sum(c, axis=1, keepdims=True) - c) / (N - 1)
        c = c.reshape(B * N, COMM)
        gates = c @ p["wih"] + p["bih"] + hid @ p["whh"] + p["bhh"]
        i_g = jax.nn.sigmoid(gates[:, :MEMORY])
        f_g = jax.nn.sigmoid(gates[:, MEMORY:2 * MEMORY])
        g_g = jnp.tanh(gates[:, 2 * MEMORY:3 * MEMORY])
        o_g = jax.nn.sigmoid(gates[:, 3 * MEMORY:])
        cell = f_g * cell + i_g * g_g
        hid = o_g * jnp.tanh(cell)
    cat = jnp.concatenate([r, hid], axis=-1)
    y = jnp.tanh(cat @ p["wo1"] + p["bo1"])
    y = jnp.tanh(y @ p["wo2"] + p["bo2"])
    y = jnp.tanh(y @ p["wo3"] + p["bo3"])
    return y.reshape(B, N, 1), jnp.exp(p["actor_logstd"])


if __name__ == "__main__":
    key = jax.random.PRNGKey(0)
    k_x, k_x2, k_p = jax.random.split(key, 3)

    N, F = 4, 8                               # agents, per-agent features
    params = init_params(k_p, input_size=F)

    # --- small case (B=2): single tile, grid=(1,) ---------------------------
    B = 2
    x = jax.random.normal(k_x, (B, N, F), jnp.float32)
    mean, std = commnet_forward(x, params)
    mean = jax.block_until_ready(mean)
    std = jax.block_until_ready(std)
    ref_mean, ref_std = commnet_ref(x, params)
    assert mean.shape == (B, N, 1)
    assert jnp.allclose(mean, ref_mean, atol=1e-4, rtol=1e-4)
    assert jnp.allclose(std, ref_std)

    # --- 2D input path (matches torch.unsqueeze(x, 0)) ----------------------
    mean1, _ = commnet_forward(x[0], params)
    mean1 = jax.block_until_ready(mean1)
    assert mean1.shape == (1, N, 1)
    assert jnp.allclose(mean1, ref_mean[:1], atol=1e-4, rtol=1e-4)

    # --- larger case (B=300): multi-tile grid + batch-tail padding ----------
    B2 = 300
    x2 = jax.random.normal(k_x2, (B2, N, F), jnp.float32)
    mean2, std2 = commnet_forward(x2, params)
    mean2 = jax.block_until_ready(mean2)
    ref_mean2, _ = commnet_ref(x2, params)
    assert mean2.shape == (B2, N, 1)
    assert jnp.allclose(mean2, ref_mean2, atol=1e-4, rtol=1e-4)

    print("KERNEL_OK")
</pallas_src>

<mosaic_0001>
module attributes {stable_mosaic.version = 11 : i64} {
  func.func @_commnet_kernel(%arg0: i32, %arg1: memref<4x8x8xf32, #tpu.memory_space<vmem>>, %arg2: memref<8x32xf32, #tpu.memory_space<vmem>>, %arg3: memref<32x32xf32, #tpu.memory_space<vmem>>, %arg4: memref<32x10xf32, #tpu.memory_space<vmem>>, %arg5: memref<10x32xf32, #tpu.memory_space<vmem>>, %arg6: memref<32x40xf32, #tpu.memory_space<vmem>>, %arg7: memref<10x40xf32, #tpu.memory_space<vmem>>, %arg8: memref<8x32xf32, #tpu.memory_space<vmem>>, %arg9: memref<10x32xf32, #tpu.memory_space<vmem>>, %arg10: memref<32x32xf32, #tpu.memory_space<vmem>>, %arg11: memref<32x128xf32, #tpu.memory_space<vmem>>, %arg12: memref<8x128xf32, #tpu.memory_space<vmem>>, %arg13: memref<4x8x128xf32, #tpu.memory_space<vmem>>) attributes {dimension_semantics = [#tpu.dimension_semantics<parallel>], iteration_bounds = array<i64: 1>, scalar_prefetch = 0 : i64, scratch_operands = 0 : i64, tpu.core_type = #tpu.core_type<tc>, window_params = [{transform_indices = @transform_0, window_bounds = array<i64: 4, 8, 8>}, {pipeline_mode = #tpu.pipeline_mode<synchronous>, transform_indices = @transform_1, window_bounds = array<i64: 8, 32>}, {pipeline_mode = #tpu.pipeline_mode<synchronous>, transform_indices = @transform_2, window_bounds = array<i64: 32, 32>}, {pipeline_mode = #tpu.pipeline_mode<synchronous>, transform_indices = @transform_3, window_bounds = array<i64: 32, 10>}, {pipeline_mode = #tpu.pipeline_mode<synchronous>, transform_indices = @transform_4, window_bounds = array<i64: 10, 32>}, {pipeline_mode = #tpu.pipeline_mode<synchronous>, transform_indices = @transform_5, window_bounds = array<i64: 32, 40>}, {pipeline_mode = #tpu.pipeline_mode<synchronous>, transform_indices = @transform_6, window_bounds = array<i64: 10, 40>}, {pipeline_mode = #tpu.pipeline_mode<synchronous>, transform_indices = @transform_7, window_bounds = array<i64: 8, 32>}, {pipeline_mode = #tpu.pipeline_mode<synchronous>, transform_indices = @transform_8, window_bounds = array<i64: 10, 32>}, {pipeline_mode = #tpu.pipeline_mode<synchronous>, transform_indices = @transform_9, window_bounds = array<i64: 32, 32>}, {pipeline_mode = #tpu.pipeline_mode<synchronous>, transform_indices = @transform_10, window_bounds = array<i64: 32, 128>}, {pipeline_mode = #tpu.pipeline_mode<synchronous>, transform_indices = @transform_11, window_bounds = array<i64: 8, 128>}, {transform_indices = @transform_12, window_bounds = array<i64: 4, 8, 128>}]} {
    %c0 = arith.constant 0 : index
    %c0_0 = arith.constant 0 : index
    %c0_1 = arith.constant 0 : index
    %0 = vector.load %arg1[%c0, %c0_0, %c0_1] : memref<4x8x8xf32, #tpu.memory_space<vmem>>, vector<4x8x8xf32>
    %1 = vector.shape_cast %0 : vector<4x8x8xf32> to vector<32x8xf32>
    %c0_2 = arith.constant 0 : index
    %c0_3 = arith.constant 0 : index
    %2 = vector.load %arg12[%c0_2, %c0_3] : memref<8x128xf32, #tpu.memory_space<vmem>>, vector<1x32xf32>
    %c1 = arith.constant 1 : index
    %c0_4 = arith.constant 0 : index
    %3 = vector.load %arg12[%c1, %c0_4] : memref<8x128xf32, #tpu.memory_space<vmem>>, vector<1x32xf32>
    %c2 = arith.constant 2 : index
    %c0_5 = arith.constant 0 : index
    %4 = vector.load %arg12[%c2, %c0_5] : memref<8x128xf32, #tpu.memory_space<vmem>>, vector<1x10xf32>
    %c3 = arith.constant 3 : index
    %c0_6 = arith.constant 0 : index
    %5 = vector.load %arg12[%c3, %c0_6] : memref<8x128xf32, #tpu.memory_space<vmem>>, vector<1x32xf32>
    %c4 = arith.constant 4 : index
    %c0_7 = arith.constant 0 : index
    %6 = vector.load %arg12[%c4, %c0_7] : memref<8x128xf32, #tpu.memory_space<vmem>>, vector<1x40xf32>
    %c5 = arith.constant 5 : index
    %c0_8 = arith.constant 0 : index
    %7 = vector.load %arg12[%c5, %c0_8] : memref<8x128xf32, #tpu.memory_space<vmem>>, vector<1x32xf32>
    %c6 = arith.constant 6 : index
    %c0_9 = arith.constant 0 : index
    %8 = vector.load %arg12[%c6, %c0_9] : memref<8x128xf32, #tpu.memory_space<vmem>>, vector<1x32xf32>
    %c7 = arith.constant 7 : index
    %c0_10 = arith.constant 0 : index
    %9 = vector.load %arg12[%c7, %c0_10] : memref<8x128xf32, #tpu.memory_space<vmem>>, vector<1x128xf32>
    %c0_11 = arith.constant 0 : index
    %c0_12 = arith.constant 0 : index
    %10 = vector.load %arg2[%c0_11, %c0_12] : memref<8x32xf32, #tpu.memory_space<vmem>>, vector<8x32xf32>
    %cst = arith.constant dense<0.000000e+00> : vector<32x32xf32>
    %11 = tpu.matmul %1, %10, %cst {dimension_numbers = #tpu.dot_dimension_numbers<[1], [0], [0], [1], [0, 0, 1, 1], [], []>} : vector<32x8xf32>, vector<8x32xf32>, vector<32x32xf32> -> vector<32x32xf32>
    %12 = vector.broadcast %2 : vector<1x32xf32> to vector<32x32xf32>
    %13 = arith.addf %11, %12 : vector<32x32xf32>
    %14 = math.tanh %13 : vector<32x32xf32>
    %c0_13 = arith.constant 0 : index
    %c0_14 = arith.constant 0 : index
    %15 = vector.load %arg3[%c0_13, %c0_14] : memref<32x32xf32, #tpu.memory_space<vmem>>, vector<32x32xf32>
    %cst_15 = arith.constant dense<0.000000e+00> : vector<32x32xf32>
    %16 = tpu.matmul %14, %15, %cst_15 {dimension_numbers = #tpu.dot_dimension_numbers<[1], [0], [0], [1], [0, 0, 1, 1], [], []>} : vector<32x32xf32>, vector<32x32xf32>, vector<32x32xf32> -> vector<32x32xf32>
    %17 = vector.broadcast %3 : vector<1x32xf32> to vector<32x32xf32>
    %18 = arith.addf %16, %17 : vector<32x32xf32>
    %19 = math.tanh %18 : vector<32x32xf32>
    %c0_16 = arith.constant 0 : index
    %c0_17 = arith.constant 0 : index
    %20 = vector.load %arg4[%c0_16, %c0_17] : memref<32x10xf32, #tpu.memory_space<vmem>>, vector<32x10xf32>
    %cst_18 = arith.constant dense<0.000000e+00> : vector<32x10xf32>
    %21 = tpu.matmul %19, %20, %cst_18 {dimension_numbers = #tpu.dot_dimension_numbers<[1], [0], [0], [1], [0, 0, 1, 1], [], []>} : vector<32x32xf32>, vector<32x10xf32>, vector<32x10xf32> -> vector<32x10xf32>
    %22 = vector.broadcast %4 : vector<1x10xf32> to vector<32x10xf32>
    %23 = arith.addf %21, %22 : vector<32x10xf32>
    %cst_19 = arith.constant 0.000000e+00 : f32
    %24 = vector.broadcast %cst_19 : f32 to vector<32x10xf32>
    %c0_20 = arith.constant 0 : index
    %c0_21 = arith.constant 0 : index
    %25 = vector.load %arg5[%c0_20, %c0_21] : memref<10x32xf32, #tpu.memory_space<vmem>>, vector<10x32xf32>
    %c0_22 = arith.constant 0 : index
    %c0_23 = arith.constant 0 : index
    %26 = vector.load %arg6[%c0_22, %c0_23] : memref<32x40xf32, #tpu.memory_space<vmem>>, vector<32x40xf32>
    %c0_24 = arith.constant 0 : index
    %c0_25 = arith.constant 0 : index
    %27 = vector.load %arg7[%c0_24, %c0_25] : memref<10x40xf32, #tpu.memory_space<vmem>>, vector<10x40xf32>
    %cst_26 = arith.constant dense<0.000000e+00> : vector<32x32xf32>
    %28 = tpu.matmul %23, %25, %cst_26 {dimension_numbers = #tpu.dot_dimension_numbers<[1], [0], [0], [1], [0, 0, 1, 1], [], []>} : vector<32x10xf32>, vector<10x32xf32>, vector<32x32xf32> -> vector<32x32xf32>
    %29 = vector.broadcast %5 : vector<1x32xf32> to vector<32x32xf32>
    %30 = arith.addf %28, %29 : vector<32x32xf32>
    %31 = math.tanh %30 : vector<32x32xf32>
    %32 = vector.shape_cast %31 : vector<32x32xf32> to vector<4x8x32xf32>
    %cst_27 = arith.constant dense<0.000000e+00> : vector<8x32xf32>
    %33 = vector.multi_reduction <add>, %32, %cst_27 [0] : vector<4x8x32xf32> to vector<8x32xf32>
    %34 = vector.shape_cast %33 : vector<8x32xf32> to vector<1x8x32xf32>
    %35 = vector.broadcast %34 : vector<1x8x32xf32> to vector<4x8x32xf32>
    %36 = arith.subf %35, %32 : vector<4x8x32xf32>
    %cst_28 = arith.constant 0.333333343 : f32
    %37 = vector.broadcast %cst_28 : f32 to vector<4x8x32xf32>
    %38 = arith.mulf %36, %37 : vector<4x8x32xf32>
    %39 = vector.shape_cast %38 : vector<4x8x32xf32> to vector<32x32xf32>
    %cst_29 = arith.constant dense<0.000000e+00> : vector<32x40xf32>
    %40 = tpu.matmul %39, %26, %cst_29 {dimension_numbers = #tpu.dot_dimension_numbers<[1], [0], [0], [1], [0, 0, 1, 1], [], []>} : vector<32x32xf32>, vector<32x40xf32>, vector<32x40xf32> -> vector<32x40xf32>
    %cst_30 = arith.constant dense<0.000000e+00> : vector<32x40xf32>
    %41 = tpu.matmul %23, %27, %cst_30 {dimension_numbers = #tpu.dot_dimension_numbers<[1], [0], [0], [1], [0, 0, 1, 1], [], []>} : vector<32x10xf32>, vector<10x40xf32>, vector<32x40xf32> -> vector<32x40xf32>
    %42 = arith.addf %40, %41 : vector<32x40xf32>
    %43 = vector.broadcast %6 : vector<1x40xf32> to vector<32x40xf32>
    %44 = arith.addf %42, %43 : vector<32x40xf32>
    %45 = arith.negf %44 : vector<32x40xf32>
    %46 = math.exp %45 : vector<32x40xf32>
    %cst_31 = arith.constant 1.000000e+00 : f32
    %47 = vector.broadcast %cst_31 : f32 to vector<32x40xf32>
    %48 = arith.addf %47, %46 : vector<32x40xf32>
    %49 = arith.divf %47, %48 : vector<32x40xf32>
    %50 = math.tanh %44 : vector<32x40xf32>
    %51 = vector.extract_strided_slice %49 {offsets = [0, 0], sizes = [32, 10], strides = [1, 1]} : vector<32x40xf32> to vector<32x10xf32>
    %52 = vector.extract_strided_slice %49 {offsets = [0, 10], sizes = [32, 10], strides = [1, 1]} : vector<32x40xf32> to vector<32x10xf32>
    %53 = vector.extract_strided_slice %50 {offsets = [0, 20], sizes = [32, 10], strides = [1, 1]} : vector<32x40xf32> to vector<32x10xf32>
    %54 = vector.extract_strided_slice %49 {offsets = [0, 30], sizes = [32, 10], strides = [1, 1]} : vector<32x40xf32> to vector<32x10xf32>
    %55 = arith.mulf %52, %24 : vector<32x10xf32>
    %56 = arith.mulf %51, %53 : vector<32x10xf32>
    %57 = arith.addf %55, %56 : vector<32x10xf32>
    %58 = math.tanh %57 : vector<32x10xf32>
    %59 = arith.mulf %54, %58 : vector<32x10xf32>
    %cst_32 = arith.constant dense<0.000000e+00> : vector<32x32xf32>
    %60 = tpu.matmul %59, %25, %cst_32 {dimension_numbers = #tpu.dot_dimension_numbers<[1], [0], [0], [1], [0, 0, 1, 1], [], []>} : vector<32x10xf32>, vector<10x32xf32>, vector<32x32xf32> -> vector<32x32xf32>
    %61 = vector.broadcast %5 : vector<1x32xf32> to vector<32x32xf32>
    %62 = arith.addf %60, %61 : vector<32x32xf32>
    %63 = math.tanh %62 : vector<32x32xf32>
    %64 = vector.shape_cast %63 : vector<32x32xf32> to vector<4x8x32xf32>
    %cst_33 = arith.constant dense<0.000000e+00> : vector<8x32xf32>
    %65 = vector.multi_reduction <add>, %64, %cst_33 [0] : vector<4x8x32xf32> to vector<8x32xf32>
    %66 = vector.shape_cast %65 : vector<8x32xf32> to vector<1x8x32xf32>
    %67 = vector.broadcast %66 : vector<1x8x32xf32> to vector<4x8x32xf32>
    %68 = arith.subf %67, %64 : vector<4x8x32xf32>
    %cst_34 = arith.constant 0.333333343 : f32
    %69 = vector.broadcast %cst_34 : f32 to vector<4x8x32xf32>
    %70 = arith.mulf %68, %69 : vector<4x8x32xf32>
    %71 = vector.shape_cast %70 : vector<4x8x32xf32> to vector<32x32xf32>
    %cst_35 = arith.constant dense<0.000000e+00> : vector<32x40xf32>
    %72 = tpu.matmul %71, %26, %cst_35 {dimension_numbers = #tpu.dot_dimension_numbers<[1], [0], [0], [1], [0, 0, 1, 1], [], []>} : vector<32x32xf32>, vector<32x40xf32>, vector<32x40xf32> -> vector<32x40xf32>
    %cst_36 = arith.constant dense<0.000000e+00> : vector<32x40xf32>
    %73 = tpu.matmul %59, %27, %cst_36 {dimension_numbers = #tpu.dot_dimension_numbers<[1], [0], [0], [1], [0, 0, 1, 1], [], []>} : vector<32x10xf32>, vector<10x40xf32>, vector<32x40xf32> -> vector<32x40xf32>
    %74 = arith.addf %72, %73 : vector<32x40xf32>
    %75 = vector.broadcast %6 : vector<1x40xf32> to vector<32x40xf32>
    %76 = arith.addf %74, %75 : vector<32x40xf32>
    %77 = arith.negf %76 : vector<32x40xf32>
    %78 = math.exp %77 : vector<32x40xf32>
    %cst_37 = arith.constant 1.000000e+00 : f32
    %79 = vector.broadcast %cst_37 : f32 to vector<32x40xf32>
    %80 = arith.addf %79, %78 : vector<32x40xf32>
    %81 = arith.divf %79, %80 : vector<32x40xf32>
    %82 = math.tanh %76 : vector<32x40xf32>
    %83 = vector.extract_strided_slice %81 {offsets = [0, 0], sizes = [32, 10], strides = [1, 1]} : vector<32x40xf32> to vector<32x10xf32>
    %84 = vector.extract_strided_slice %81 {offsets = [0, 10], sizes = [32, 10], strides = [1, 1]} : vector<32x40xf32> to vector<32x10xf32>
    %85 = vector.extract_strided_slice %82 {offsets = [0, 20], sizes = [32, 10], strides = [1, 1]} : vector<32x40xf32> to vector<32x10xf32>
    %86 = vector.extract_strided_slice %81 {offsets = [0, 30], sizes = [32, 10], strides = [1, 1]} : vector<32x40xf32> to vector<32x10xf32>
    %87 = arith.mulf %84, %57 : vector<32x10xf32>
    %88 = arith.mulf %83, %85 : vector<32x10xf32>
    %89 = arith.addf %87, %88 : vector<32x10xf32>
    %90 = math.tanh %89 : vector<32x10xf32>
    %91 = arith.mulf %86, %90 : vector<32x10xf32>
    %c0_38 = arith.constant 0 : index
    %c0_39 = arith.constant 0 : index
    %92 = vector.load %arg8[%c0_38, %c0_39] : memref<8x32xf32, #tpu.memory_space<vmem>>, vector<8x32xf32>
    %cst_40 = arith.constant dense<0.000000e+00> : vector<32x32xf32>
    %93 = tpu.matmul %1, %92, %cst_40 {dimension_numbers = #tpu.dot_dimension_numbers<[1], [0], [0], [1], [0, 0, 1, 1], [], []>} : vector<32x8xf32>, vector<8x32xf32>, vector<32x32xf32> -> vector<32x32xf32>
    %c0_41 = arith.constant 0 : index
    %c0_42 = arith.constant 0 : index
    %94 = vector.load %arg9[%c0_41, %c0_42] : memref<10x32xf32, #tpu.memory_space<vmem>>, vector<10x32xf32>
    %cst_43 = arith.constant dense<0.000000e+00> : vector<32x32xf32>
    %95 = tpu.matmul %91, %94, %cst_43 {dimension_numbers = #tpu.dot_dimension_numbers<[1], [0], [0], [1], [0, 0, 1, 1], [], []>} : vector<32x10xf32>, vector<10x32xf32>, vector<32x32xf32> -> vector<32x32xf32>
    %96 = arith.addf %93, %95 : vector<32x32xf32>
    %97 = vector.broadcast %7 : vector<1x32xf32> to vector<32x32xf32>
    %98 = arith.addf %96, %97 : vector<32x32xf32>
    %99 = math.tanh %98 : vector<32x32xf32>
    %c0_44 = arith.constant 0 : index
    %c0_45 = arith.constant 0 : index
    %100 = vector.load %arg10[%c0_44, %c0_45] : memref<32x32xf32, #tpu.memory_space<vmem>>, vector<32x32xf32>
    %cst_46 = arith.constant dense<0.000000e+00> : vector<32x32xf32>
    %101 = tpu.matmul %99, %100, %cst_46 {dimension_numbers = #tpu.dot_dimension_numbers<[1], [0], [0], [1], [0, 0, 1, 1], [], []>} : vector<32x32xf32>, vector<32x32xf32>, vector<32x32xf32> -> vector<32x32xf32>
    %102 = vector.broadcast %8 : vector<1x32xf32> to vector<32x32xf32>
    %103 = arith.addf %101, %102 : vector<32x32xf32>
    %104 = math.tanh %103 : vector<32x32xf32>
    %c0_47 = arith.constant 0 : index
    %c0_48 = arith.constant 0 : index
    %105 = vector.load %arg11[%c0_47, %c0_48] : memref<32x128xf32, #tpu.memory_space<vmem>>, vector<32x128xf32>
    %cst_49 = arith.constant dense<0.000000e+00> : vector<32x128xf32>
    %106 = tpu.matmul %104, %105, %cst_49 {dimension_numbers = #tpu.dot_dimension_numbers<[1], [0], [0], [1], [0, 0, 1, 1], [], []>} : vector<32x32xf32>, vector<32x128xf32>, vector<32x128xf32> -> vector<32x128xf32>
    %107 = vector.broadcast %9 : vector<1x128xf32> to vector<32x128xf32>
    %108 = arith.addf %106, %107 : vector<32x128xf32>
    %109 = math.tanh %108 : vector<32x128xf32>
    %110 = vector.shape_cast %109 : vector<32x128xf32> to vector<4x8x128xf32>
    %c0_50 = arith.constant 0 : index
    %c0_51 = arith.constant 0 : index
    %c0_52 = arith.constant 0 : index
    %111 = vector.load %arg13[%c0_50, %c0_51, %c0_52] : memref<4x8x128xf32, #tpu.memory_space<vmem>>, vector<4x8x128xf32>
    tpu.vector_store %arg13[%c0_50, %c0_51, %c0_52], %110 {strides = array<i32>} : memref<4x8x128xf32, #tpu.memory_space<vmem>>, vector<4x8x128xf32>,
    return
  }
  func.func @transform_0(%arg0: i32) -> (i32, i32, i32) {
    %c0_i32 = arith.constant 0 : i32
    %c0_i32_0 = arith.constant 0 : i32
    %c0_i32_1 = arith.constant 0 : i32
    return %c0_i32, %arg0, %c0_i32_0 : i32, i32, i32
  }
  func.func @transform_1(%arg0: i32) -> (i32, i32) {
    %c0_i32 = arith.constant 0 : i32
    %c0_i32_0 = arith.constant 0 : i32
    %c0_i32_1 = arith.constant 0 : i32
    return %c0_i32, %c0_i32_0 : i32, i32
  }
  func.func @transform_2(%arg0: i32) -> (i32, i32) {
    %c0_i32 = arith.constant 0 : i32
    %c0_i32_0 = arith.constant 0 : i32
    %c0_i32_1 = arith.constant 0 : i32
    return %c0_i32, %c0_i32_0 : i32, i32
  }
  func.func @transform_3(%arg0: i32) -> (i32, i32) {
    %c0_i32 = arith.constant 0 : i32
    %c0_i32_0 = arith.constant 0 : i32
    %c0_i32_1 = arith.constant 0 : i32
    return %c0_i32, %c0_i32_0 : i32, i32
  }
  func.func @transform_4(%arg0: i32) -> (i32, i32) {
    %c0_i32 = arith.constant 0 : i32
    %c0_i32_0 = arith.constant 0 : i32
    %c0_i32_1 = arith.constant 0 : i32
    return %c0_i32, %c0_i32_0 : i32, i32
  }
  func.func @transform_5(%arg0: i32) -> (i32, i32) {
    %c0_i32 = arith.constant 0 : i32
    %c0_i32_0 = arith.constant 0 : i32
    %c0_i32_1 = arith.constant 0 : i32
    return %c0_i32, %c0_i32_0 : i32, i32
  }
  func.func @transform_6(%arg0: i32) -> (i32, i32) {
    %c0_i32 = arith.constant 0 : i32
    %c0_i32_0 = arith.constant 0 : i32
    %c0_i32_1 = arith.constant 0 : i32
    return %c0_i32, %c0_i32_0 : i32, i32
  }
  func.func @transform_7(%arg0: i32) -> (i32, i32) {
    %c0_i32 = arith.constant 0 : i32
    %c0_i32_0 = arith.constant 0 : i32
    %c0_i32_1 = arith.constant 0 : i32
    return %c0_i32, %c0_i32_0 : i32, i32
  }
  func.func @transform_8(%arg0: i32) -> (i32, i32) {
    %c0_i32 = arith.constant 0 : i32
    %c0_i32_0 = arith.constant 0 : i32
    %c0_i32_1 = arith.constant 0 : i32
    return %c0_i32, %c0_i32_0 : i32, i32
  }
  func.func @transform_9(%arg0: i32) -> (i32, i32) {
    %c0_i32 = arith.constant 0 : i32
    %c0_i32_0 = arith.constant 0 : i32
    %c0_i32_1 = arith.constant 0 : i32
    return %c0_i32, %c0_i32_0 : i32, i32
  }
  func.func @transform_10(%arg0: i32) -> (i32, i32) {
    %c0_i32 = arith.constant 0 : i32
    %c0_i32_0 = arith.constant 0 : i32
    %c0_i32_1 = arith.constant 0 : i32
    return %c0_i32, %c0_i32_0 : i32, i32
  }
  func.func @transform_11(%arg0: i32) -> (i32, i32) {
    %c0_i32 = arith.constant 0 : i32
    %c0_i32_0 = arith.constant 0 : i32
    %c0_i32_1 = arith.constant 0 : i32
    return %c0_i32, %c0_i32_0 : i32, i32
  }
  func.func @transform_12(%arg0: i32) -> (i32, i32, i32) {
    %c0_i32 = arith.constant 0 : i32
    %c0_i32_0 = arith.constant 0 : i32
    %c0_i32_1 = arith.constant 0 : i32
    return %c0_i32, %arg0, %c0_i32_0 : i32, i32, i32
  }
}

</mosaic_0001>

<llo_original>
// kernel: tpu_custom_call.1
$region0: #{tpu_custom_call.1}
  #allocation0 [shape = 'u32[]', space=smem, size = 0x4, offset = 0x4, fixed_abs, tag = 'smem constant byte address 0x4 - core index']
  #allocation1 [shape = 'u32[144,128]{1,0:T(1,128)}', space=vmem, size = 0x12000, scoped, tag = 'internal scratch']
  %s0 = inlined_call_operand.vmem [shape: f32[4,8,8], index: 0, kind: input, shape index: {}]
  %s1 = inlined_call_operand.hbm [shape: f32[8,32], index: 1, kind: input, shape index: {}]
  %s2 = inlined_call_operand.hbm [shape: f32[32,32], index: 2, kind: input, shape index: {}]
  %s3 = inlined_call_operand.vmem [shape: f32[32,10], index: 3, kind: input, shape index: {}]
  %s4 = inlined_call_operand.hbm [shape: f32[10,32], index: 4, kind: input, shape index: {}]
  %s5 = inlined_call_operand.vmem [shape: f32[32,40], index: 5, kind: input, shape index: {}]
  %s6 = inlined_call_operand.hbm [shape: f32[10,40], index: 6, kind: input, shape index: {}]
  %s7 = inlined_call_operand.vmem [shape: f32[8,32], index: 7, kind: input, shape index: {}]
  %s8 = inlined_call_operand.hbm [shape: f32[10,32], index: 8, kind: input, shape index: {}]
  %s9 = inlined_call_operand.hbm [shape: f32[32,32], index: 9, kind: input, shape index: {}]
  %s10 = inlined_call_operand.hbm [shape: f32[32,128], index: 10, kind: input, shape index: {}]
  %s11 = inlined_call_operand.vmem [shape: f32[8,128], index: 11, kind: input, shape index: {}]
  %s12 = inlined_call_operand.hbm [shape: f32[4,8,128], index: 12, kind: output, shape index: {}]
  %s13 = sld [smem:[#allocation0]]
  $region86: #{tpu_custom_call.1} parent=0
    _
  %s15 = ssub.s32 1, %s13
  %s16 = scalar_select 0, %s15, %s13
  $region1: #{tpu_custom_call.1} parent=0
    #allocation2 [shape = 'u8[4096]{0}', space=vmem, size = 0x1000, scoped, tag = 'input window, operand 1, single buffered']
    #allocation3 [shape = 's32[1]{0}', space=sflag, size = 0x4, scoped, tag = 'scoped memory for tpu_custom_call.1']
    #allocation4 [shape = 's32[1]{0}', space=sflag, size = 0x4, scoped, tag = 'scoped memory for tpu_custom_call.1']
    #allocation5 [shape = 'u8[16384]{0}', space=vmem, size = 0x4000, scoped, tag = 'input window, operand 2, single buffered']
    #allocation6 [shape = 's32[1]{0}', space=sflag, size = 0x4, scoped, tag = 'scoped memory for tpu_custom_call.1']
    #allocation7 [shape = 'u8[8192]{0}', space=vmem, size = 0x2000, scoped, tag = 'input window, operand 4, single buffered']
    #allocation8 [shape = 'u8[8192]{0}', space=vmem, size = 0x2000, scoped, tag = 'input window, operand 6, single buffered']
    #allocation9 [shape = 's32[1]{0}', space=sflag, size = 0x4, scoped, tag = 'scoped memory for tpu_custom_call.1']
    #allocation10 [shape = 'u8[8192]{0}', space=vmem, size = 0x2000, scoped, tag = 'input window, operand 8, single buffered']
    #allocation11 [shape = 'u8[16384]{0}', space=vmem, size = 0x4000, scoped, tag = 'input window, operand 9, single buffered']
    #allocation12 [shape = 's32[1]{0}', space=sflag, size = 0x4, scoped, tag = 'scoped memory for tpu_custom_call.1']
    #allocation13 [shape = 'u8[16384]{0}', space=vmem, size = 0x4000, scoped, tag = 'input window, operand 10, single buffered']
    #allocation14 [shape = 'u8[16384]{0}', space=vmem, size = 0x4000, scoped, tag = 'output window, operand 0, single buffered']
    %17 = vsyncpa [#allocation3], 0
    %18 = vsyncpa [#allocation6], 0
    %19 = vsyncpa [#allocation9], 0
    %20 = vsyncpa [#allocation12], 0
    %21 = vsyncpa [#allocation4], 0
    // Predicated region
    $region2: #{tpu_custom_call.1} parent=1 // pred_check
      _
    $region3: #{tpu_custom_call.1} parent=1 // pred_check_branch
      %23 = sbr.rel (0) target = $region5
    $region4: #{tpu_custom_call.1} parent=1 // pred_region
      _
    $region5: #{tpu_custom_call.1} parent=1 // pred_fallthru
      _
    // Predicated region
    $region6: #{tpu_custom_call.1} parent=1 // pred_check
      _
    $region7: #{tpu_custom_call.1} parent=1 // pred_check_branch
      %25 = sbr.rel (0) target = $region9
    $region8: #{tpu_custom_call.1} parent=1 // pred_region
      %s27 = ssub.s32 128, 128
      %28 = vsyncadd [#allocation3], %s27
      %s30 = sshll.u32 [#allocation2], 4
      %s31 = int_to_ptr.vmem [resolvable:$true] %s30
      %33 = dma.hbm_to_vmem [thread:$0]  %s1, 128, %s31, [#allocation3]
    $region9: #{tpu_custom_call.1} parent=1 // pred_fallthru
      _
    // Predicated region
    $region10: #{tpu_custom_call.1} parent=1 // pred_check
      _
    $region11: #{tpu_custom_call.1} parent=1 // pred_check_branch
      %35 = sbr.rel (0) target = $region13
    $region12: #{tpu_custom_call.1} parent=1 // pred_region
      %s37 = ssub.s32 512, 512
      %38 = vsyncadd [#allocation6], %s37
      %s39 = sshll.u32 [#allocation5], 4
      %s40 = int_to_ptr.vmem [resolvable:$true] %s39
      %45 = dma.hbm_to_vmem [thread:$0]  %s2, 512, %s40, [#allocation6], 128, 128, 8
    $region13: #{tpu_custom_call.1} parent=1 // pred_fallthru
      _
    // Predicated region
    $region14: #{tpu_custom_call.1} parent=1 // pred_check
      _
    $region15: #{tpu_custom_call.1} parent=1 // pred_check_branch
      %47 = sbr.rel (0) target = $region17
    $region16: #{tpu_custom_call.1} parent=1 // pred_region
      _
    $region17: #{tpu_custom_call.1} parent=1 // pred_fallthru
      _
    // Predicated region
    $region18: #{tpu_custom_call.1} parent=1 // pred_check
      _
    $region19: #{tpu_custom_call.1} parent=1 // pred_check_branch
      %49 = sbr.rel (0) target = $region21
    $region20: #{tpu_custom_call.1} parent=1 // pred_region
      %s51 = ssub.s32 256, 256
      %52 = vsyncadd [#allocation6], %s51
      %s53 = sshll.u32 [#allocation7], 4
      %s54 = int_to_ptr.vmem [resolvable:$true] %s53
      %59 = dma.hbm_to_vmem [thread:$0]  %s4, 256, %s54, [#allocation6], 128, 128, 8
    $region21: #{tpu_custom_call.1} parent=1 // pred_fallthru
      _
    // Predicated region
    $region22: #{tpu_custom_call.1} parent=1 // pred_check
      _
    $region23: #{tpu_custom_call.1} parent=1 // pred_check_branch
      %61 = sbr.rel (0) target = $region25
    $region24: #{tpu_custom_call.1} parent=1 // pred_region
      _
    $region25: #{tpu_custom_call.1} parent=1 // pred_fallthru
      _
    // Predicated region
    $region26: #{tpu_custom_call.1} parent=1 // pred_check
      _
    $region27: #{tpu_custom_call.1} parent=1 // pred_check_branch
      %63 = sbr.rel (0) target = $region29
    $region28: #{tpu_custom_call.1} parent=1 // pred_region
      %s65 = ssub.s32 256, 256
      %66 = vsyncadd [#allocation9], %s65
      %s67 = sshll.u32 [#allocation8], 4
      %s68 = int_to_ptr.vmem [resolvable:$true] %s67
      %73 = dma.hbm_to_vmem [thread:$0]  %s6, 256, %s68, [#allocation9], 128, 128, 8
    $region29: #{tpu_custom_call.1} parent=1 // pred_fallthru
      _
    // Predicated region
    $region30: #{tpu_custom_call.1} parent=1 // pred_check
      _
    $region31: #{tpu_custom_call.1} parent=1 // pred_check_branch
      %75 = sbr.rel (0) target = $region33
    $region32: #{tpu_custom_call.1} parent=1 // pred_region
      _
    $region33: #{tpu_custom_call.1} parent=1 // pred_fallthru
      _
    // Predicated region
    $region34: #{tpu_custom_call.1} parent=1 // pred_check
      _
    $region35: #{tpu_custom_call.1} parent=1 // pred_check_branch
      %77 = sbr.rel (0) target = $region37
    $region36: #{tpu_custom_call.1} parent=1 // pred_region
      %s79 = ssub.s32 256, 256
      %80 = vsyncadd [#allocation9], %s79
      %s81 = sshll.u32 [#allocation10], 4
      %s82 = int_to_ptr.vmem [resolvable:$true] %s81
      %87 = dma.hbm_to_vmem [thread:$0]  %s8, 256, %s82, [#allocation9], 128, 128, 8
    $region37: #{tpu_custom_call.1} parent=1 // pred_fallthru
      _
    // Predicated region
    $region38: #{tpu_custom_call.1} parent=1 // pred_check
      _
    $region39: #{tpu_custom_call.1} parent=1 // pred_check_branch
      %89 = sbr.rel (0) target = $region41
    $region40: #{tpu_custom_call.1} parent=1 // pred_region
      %s91 = ssub.s32 512, 512
      %92 = vsyncadd [#allocation12], %s91
      %s93 = sshll.u32 [#allocation11], 4
      %s94 = int_to_ptr.vmem [resolvable:$true] %s93
      %99 = dma.hbm_to_vmem [thread:$0]  %s9, 512, %s94, [#allocation12], 128, 128, 8
    $region41: #{tpu_custom_call.1} parent=1 // pred_fallthru
      _
    // Predicated region
    $region42: #{tpu_custom_call.1} parent=1 // pred_check
      _
    $region43: #{tpu_custom_call.1} parent=1 // pred_check_branch
      %101 = sbr.rel (0) target = $region45
    $region44: #{tpu_custom_call.1} parent=1 // pred_region
      %s103 = ssub.s32 512, 512
      %104 = vsyncadd [#allocation12], %s103
      %s105 = sshll.u32 [#allocation13], 4
      %s106 = int_to_ptr.vmem [resolvable:$true] %s105
      %111 = dma.hbm_to_vmem [thread:$0]  %s10, 512, %s106, [#allocation12], 128, 128, 8
    $region45: #{tpu_custom_call.1} parent=1 // pred_fallthru
      _
    // Predicated region
    $region46: #{tpu_custom_call.1} parent=1 // pred_check
      _
    $region47: #{tpu_custom_call.1} parent=1 // pred_check_branch
      %113 = sbr.rel (0) target = $region49
    $region48: #{tpu_custom_call.1} parent=1 // pred_region
      _
    $region49: #{tpu_custom_call.1} parent=1 // pred_fallthru
      _
    // Predicated region
    $region50: #{tpu_custom_call.1} parent=1 // pred_check
      _
    $region51: #{tpu_custom_call.1} parent=1 // pred_check_branch
      %115 = sbr.rel (0) target = $region53
    $region52: #{tpu_custom_call.1} parent=1 // pred_region
      %116 = dma.done [#allocation3], 128
    $region53: #{tpu_custom_call.1} parent=1 // pred_fallthru
      _
    // Predicated region
    $region54: #{tpu_custom_call.1} parent=1 // pred_check
      _
    $region55: #{tpu_custom_call.1} parent=1 // pred_check_branch
      %118 = sbr.rel (0) target = $region57
    $region56: #{tpu_custom_call.1} parent=1 // pred_region
      %119 = dma.done [#allocation6], 512
    $region57: #{tpu_custom_call.1} parent=1 // pred_fallthru
      _
    // Predicated region
    $region58: #{tpu_custom_call.1} parent=1 // pred_check
      _
    $region59: #{tpu_custom_call.1} parent=1 // pred_check_branch
      %121 = sbr.rel (0) target = $region61
    $region60: #{tpu_custom_call.1} parent=1 // pred_region
      %122 = dma.done [#allocation6], 256
    $region61: #{tpu_custom_call.1} parent=1 // pred_fallthru
      _
    // Predicated region
    $region62: #{tpu_custom_call.1} parent=1 // pred_check
      _
    $region63: #{tpu_custom_call.1} parent=1 // pred_check_branch
      %124 = sbr.rel (0) target = $region65
    $region64: #{tpu_custom_call.1} parent=1 // pred_region
      %125 = dma.done [#allocation9], 256
    $region65: #{tpu_custom_call.1} parent=1 // pred_fallthru
      _
    // Predicated region
    $region66: #{tpu_custom_call.1} parent=1 // pred_check
      _
    $region67: #{tpu_custom_call.1} parent=1 // pred_check_branch
      %127 = sbr.rel (0) target = $region69
    $region68: #{tpu_custom_call.1} parent=1 // pred_region
      %128 = dma.done [#allocation9], 256
    $region69: #{tpu_custom_call.1} parent=1 // pred_fallthru
      _
    // Predicated region
    $region70: #{tpu_custom_call.1} parent=1 // pred_check
      _
    $region71: #{tpu_custom_call.1} parent=1 // pred_check_branch
      %130 = sbr.rel (0) target = $region73
    $region72: #{tpu_custom_call.1} parent=1 // pred_region
      %131 = dma.done [#allocation12], 512
    $region73: #{tpu_custom_call.1} parent=1 // pred_fallthru
      _
    // Predicated region
    $region74: #{tpu_custom_call.1} parent=1 // pred_check
      _
    $region75: #{tpu_custom_call.1} parent=1 // pred_check_branch
      %133 = sbr.rel (0) target = $region77
    $region76: #{tpu_custom_call.1} parent=1 // pred_region
      %134 = dma.done [#allocation12], 512
    $region77: #{tpu_custom_call.1} parent=1 // pred_fallthru
      _
    %v135 = vld [vmem:[%s0] sm:$0xff]
    %v136 = vld [vmem:[%s0 + $0x8] sm:$0xff]
    %v137 = vld [vmem:[%s0 + $0x10] sm:$0xff]
    %v138 = vld [vmem:[%s0 + $0x18] sm:$0xff]
    %v139 = vld [vmem:[%s11] sm:$0x1]
    %v140 = vld [vmem:[%s11 + $0x1] sm:$0x1]
    %v141 = vld [vmem:[%s11 + $0x2] sm:$0x1]
    %v142 = vld [vmem:[%s11 + $0x3] sm:$0x1]
    %v143 = vld [vmem:[%s11 + $0x4] sm:$0x1]
    %v144 = vld [vmem:[%s11 + $0x5] sm:$0x1]
    %v145 = vld [vmem:[%s11 + $0x6] sm:$0x1]
    %v146 = vld [vmem:[%s11 + $0x7] sm:$0x1]
    %v147 = vld [vmem:[#allocation2] sm:$0xff]
    %v148 = vlaneseq
    %v149 = vshrl.u32 %v148, 7
    %v150 = vsub.s32 0, %v149
    %v151 = vrot.slane %v139, %v150
    %vm152 = vcmask 64512
    %v154 = vsel %vm152, %v135, 0
    %v157 = vsel %vm152, %v136, 0
    %v160 = vsel %vm152, %v137, 0
    %v163 = vsel %vm152, %v138, 0
    %165 = vmatprep.subr.mxu0 0.0
    %166 = vmatpush1.msra.mxu0 %v147
    %167 = vmatprep.subr.mxu0 0.0
    %168 = vmatpush1.msra.mxu0 0.0
    %169 = vmatprep.subr.mxu0 0.0
    %170 = vmatpush1.msra.mxu0 0.0
    %171 = vmatprep.subr.mxu0 0.0
    %172 = vmatpush1.msra.mxu0 0.0
    %173 = vmatprep.subr.mxu0 0.0
    %174 = vmatpush1.msra.mxu0 0.0
    %175 = vmatprep.subr.mxu0 0.0
    %176 = vmatpush1.msra.mxu0 0.0
    %177 = vmatprep.subr.mxu0 0.0
    %178 = vmatpush1.msra.mxu0 0.0
    %179 = vmatprep.subr.mxu0 0.0
    %180 = vmatpush1.msra.mxu0 0.0
    %181 = vmatprep.subr.mxu0 0.0
    %182 = vmatpush1.msra.mxu0 0.0
    %183 = vmatprep.subr.mxu0 0.0
    %184 = vmatpush1.msra.mxu0 0.0
    %185 = vmatprep.subr.mxu0 0.0
    %186 = vmatpush1.msra.mxu0 0.0
    %187 = vmatprep.subr.mxu0 0.0
    %188 = vmatpush1.msra.mxu0 0.0
    %189 = vmatprep.subr.mxu0 0.0
    %190 = vmatpush1.msra.mxu0 0.0
    %191 = vmatprep.subr.mxu0 0.0
    %192 = vmatpush1.msra.mxu0 0.0
    %193 = vmatprep.subr.mxu0 0.0
    %194 = vmatpush1.msra.mxu0 0.0
    %195 = vmatprep.subr.mxu0 0.0
    %196 = vmatpush1.msra.mxu0 0.0
    %197 = vmatprep.subr.mxu0 0.0
    %198 = vmatpush1.msra.mxu0 0.0
    %199 = vmatprep.subr.mxu0 0.0
    %200 = vmatpush1.msra.mxu0 0.0
    %201 = vmatprep.subr.mxu0 0.0
    %202 = vmatpush1.msra.mxu0 0.0
    %203 = vmatprep.subr.mxu0 0.0
    %204 = vmatpush1.msra.mxu0 0.0
    %205 = vmatprep.subr.mxu0 0.0
    %206 = vmatpush1.msra.mxu0 0.0
    %207 = vmatprep.subr.mxu0 0.0
    %208 = vmatpush1.msra.mxu0 0.0
    %209 = vmatprep.subr.mxu0 0.0
    %210 = vmatpush1.msra.mxu0 0.0
    %211 = vmatprep.subr.mxu0 0.0
    %212 = vmatpush1.msra.mxu0 0.0
    %213 = vmatprep.subr.mxu0 0.0
    %214 = vmatpush1.msra.mxu0 0.0
    %215 = vmatprep.subr.mxu0 0.0
    %216 = vmatpush1.msra.mxu0 0.0
    %217 = vmatprep.subr.mxu0 0.0
    %218 = vmatpush1.msra.mxu0 0.0
    %219 = vmatprep.subr.mxu0 0.0
    %220 = vmatpush1.msra.mxu0 0.0
    %221 = vmatprep.subr.mxu0 0.0
    %222 = vmatpush1.msra.mxu0 0.0
    %223 = vmatprep.subr.mxu0 0.0
    %224 = vmatpush1.msra.mxu0 0.0
    %225 = vmatprep.subr.mxu0 0.0
    %226 = vmatpush1.msra.mxu0 0.0
    %227 = vmatprep.subr.mxu0 0.0
    %228 = vmatpush1.msra.mxu0 0.0
    %229 = vmatprep.mubr.f32.mxu0 0.0
    %230 = vmatmul.mubr.f32.gmra.mrb[0].mxu0 %v154
    %v231 = vpop.f32.mrb[0].mxu0
    %v232 = vadd.f32 %v151, %v231
    %v233 = vpop.f32.mrb[0].mxu0
    %234 = vmatprep.mubr.f32.mxu0 0.0
    %235 = vmatmul.mubr.f32.gmra.mrb[0].mxu0 %v157
    %v236 = vpop.f32.mrb[0].mxu0
    %v237 = vadd.f32 %v151, %v236
    %v238 = vpop.f32.mrb[0].mxu0
    %239 = vmatprep.mubr.f32.mxu0 0.0
    %240 = vmatmul.mubr.f32.gmra.mrb[0].mxu0 %v160
    %v241 = vpop.f32.mrb[0].mxu0
    %v242 = vadd.f32 %v151, %v241
    %v243 = vpop.f32.mrb[0].mxu0
    %244 = vmatprep.mubr.f32.mxu0 0.0
    %245 = vmatmul.mubr.f32.gmra.mrb[0].mxu0 %v163
    %v246 = vpop.f32.mrb[0].mxu0
    %v247 = vadd.f32 %v151, %v246
    %v248 = vpop.f32.mrb[0].mxu0
    %249 = vdwg.mxu0
    %v250 = vtanh.pop %v232
    %v251 = vtanh.pop %v237
    %v252 = vtanh.pop %v242
    %v253 = vtanh.pop %v247
    %v254 = vld [vmem:[#allocation5] sm:$0xff]
    %v255 = vld [vmem:[#allocation5 + $0x8] sm:$0xff]
    %v256 = vld [vmem:[#allocation5 + $0x10] sm:$0xff]
    %v257 = vld [vmem:[#allocation5 + $0x18] sm:$0xff]
    %v258 = vlaneseq
    %v259 = vshrl.u32 %v258, 7
    %v260 = vsub.s32 0, %v259
    %v261 = vrot.slane %v140, %v260
    %vm262 = vcmask 261120
    %v264 = vsel %vm262, %v250, 0
    %v267 = vsel %vm262, %v251, 0
    %v270 = vsel %vm262, %v252, 0
    %v273 = vsel %vm262, %v253, 0
    %275 = vmatprep.subr.mxu0 0.0
    %276 = vmatpush1.msra.mxu0 %v254
    %277 = vmatprep.subr.mxu0 0.0
    %278 = vmatpush1.msra.mxu0 %v255
    %279 = vmatprep.subr.mxu0 0.0
    %280 = vmatpush1.msra.mxu0 %v256
    %281 = vmatprep.subr.mxu0 0.0
    %282 = vmatpush1.msra.mxu0 %v257
    %283 = vmatprep.subr.mxu0 0.0
    %284 = vmatpush1.msra.mxu0 0.0
    %285 = vmatprep.subr.mxu0 0.0
    %286 = vmatpush1.msra.mxu0 0.0
    %287 = vmatprep.subr.mxu0 0.0
    %288 = vmatpush1.msra.mxu0 0.0
    %289 = vmatprep.subr.mxu0 0.0
    %290 = vmatpush1.msra.mxu0 0.0
    %291 = vmatprep.subr.mxu0 0.0
    %292 = vmatpush1.msra.mxu0 0.0
    %293 = vmatprep.subr.mxu0 0.0
    %294 = vmatpush1.msra.mxu0 0.0
    %295 = vmatprep.subr.mxu0 0.0
    %296 = vmatpush1.msra.mxu0 0.0
    %297 = vmatprep.subr.mxu0 0.0
    %298 = vmatpush1.msra.mxu0 0.0
    %299 = vmatprep.subr.mxu0 0.0
    %300 = vmatpush1.msra.mxu0 0.0
    %301 = vmatprep.subr.mxu0 0.0
    %302 = vmatpush1.msra.mxu0 0.0
    %303 = vmatprep.subr.mxu0 0.0
    %304 = vmatpush1.msra.mxu0 0.0
    %305 = vmatprep.subr.mxu0 0.0
    %306 = vmatpush1.msra.mxu0 0.0
    %307 = vmatprep.subr.mxu0 0.0
    %308 = vmatpush1.msra.mxu0 0.0
    %309 = vmatprep.subr.mxu0 0.0
    %310 = vmatpush1.msra.mxu0 0.0
    %311 = vmatprep.subr.mxu0 0.0
    %312 = vmatpush1.msra.mxu0 0.0
    %313 = vmatprep.subr.mxu0 0.0
    %314 = vmatpush1.msra.mxu0 0.0
    %315 = vmatprep.subr.mxu0 0.0
    %316 = vmatpush1.msra.mxu0 0.0
    %317 = vmatprep.subr.mxu0 0.0
    %318 = vmatpush1.msra.mxu0 0.0
    %319 = vmatprep.subr.mxu0 0.0
    %320 = vmatpush1.msra.mxu0 0.0
    %321 = vmatprep.subr.mxu0 0.0
    %322 = vmatpush1.msra.mxu0 0.0
    %323 = vmatprep.subr.mxu0 0.0
    %324 = vmatpush1.msra.mxu0 0.0
    %325 = vmatprep.subr.mxu0 0.0
    %326 = vmatpush1.msra.mxu0 0.0
    %327 = vmatprep.subr.mxu0 0.0
    %328 = vmatpush1.msra.mxu0 0.0
    %329 = vmatprep.subr.mxu0 0.0
    %330 = vmatpush1.msra.mxu0 0.0
    %331 = vmatprep.subr.mxu0 0.0
    %332 = vmatpush1.msra.mxu0 0.0
    %333 = vmatprep.subr.mxu0 0.0
    %334 = vmatpush1.msra.mxu0 0.0
    %335 = vmatprep.subr.mxu0 0.0
    %336 = vmatpush1.msra.mxu0 0.0
    %337 = vmatprep.subr.mxu0 0.0
    %338 = vmatpush1.msra.mxu0 0.0
    %339 = vmatprep.mubr.f32.mxu0 0.0
    %340 = vmatmul.mubr.f32.gmra.mrb[0].mxu0 %v264
    %v341 = vpop.f32.mrb[0].mxu0
    %v342 = vadd.f32 %v261, %v341
    %v343 = vpop.f32.mrb[0].mxu0
    %344 = vmatprep.mubr.f32.mxu0 0.0
    %345 = vmatmul.mubr.f32.gmra.mrb[0].mxu0 %v267
    %v346 = vpop.f32.mrb[0].mxu0
    %v347 = vadd.f32 %v261, %v346
    %v348 = vpop.f32.mrb[0].mxu0
    %349 = vmatprep.mubr.f32.mxu0 0.0
    %350 = vmatmul.mubr.f32.gmra.mrb[0].mxu0 %v270
    %v351 = vpop.f32.mrb[0].mxu0
    %v352 = vadd.f32 %v261, %v351
    %v353 = vpop.f32.mrb[0].mxu0
    %354 = vmatprep.mubr.f32.mxu0 0.0
    %355 = vmatmul.mubr.f32.gmra.mrb[0].mxu0 %v273
    %v356 = vpop.f32.mrb[0].mxu0
    %v357 = vadd.f32 %v261, %v356
    %v358 = vpop.f32.mrb[0].mxu0
    %359 = vdwg.mxu0
    %v360 = vtanh.pop %v342
    %v361 = vtanh.pop %v347
    %v362 = vtanh.pop %v352
    %v363 = vtanh.pop %v357
    %v364 = vld [vmem:[%s3] sm:$0xff]
    %v365 = vld [vmem:[%s3 + $0x8] sm:$0xff]
    %v366 = vld [vmem:[%s3 + $0x10] sm:$0xff]
    %v367 = vld [vmem:[%s3 + $0x18] sm:$0xff]
    %v368 = vlaneseq
    %v369 = vshrl.u32 %v368, 7
    %v370 = vsub.s32 0, %v369
    %v371 = vrot.slane %v141, %v370
    %v373 = vsel %vm262, %v360, 0
    %v376 = vsel %vm262, %v361, 0
    %v379 = vsel %vm262, %v362, 0
    %v382 = vsel %vm262, %v363, 0
    %384 = vmatprep.subr.mxu0 0.0
    %385 = vmatpush1.msra.mxu0 %v364
    %386 = vmatprep.subr.mxu0 0.0
    %387 = vmatpush1.msra.mxu0 %v365
    %388 = vmatprep.subr.mxu0 0.0
    %389 = vmatpush1.msra.mxu0 %v366
    %390 = vmatprep.subr.mxu0 0.0
    %391 = vmatpush1.msra.mxu0 %v367
    %392 = vmatprep.subr.mxu0 0.0
    %393 = vmatpush1.msra.mxu0 0.0
    %394 = vmatprep.subr.mxu0 0.0
    %395 = vmatpush1.msra.mxu0 0.0
    %396 = vmatprep.subr.mxu0 0.0
    %397 = vmatpush1.msra.mxu0 0.0
    %398 = vmatprep.subr.mxu0 0.0
    %399 = vmatpush1.msra.mxu0 0.0
    %400 = vmatprep.subr.mxu0 0.0
    %401 = vmatpush1.msra.mxu0 0.0
    %402 = vmatprep.subr.mxu0 0.0
    %403 = vmatpush1.msra.mxu0 0.0
    %404 = vmatprep.subr.mxu0 0.0
    %405 = vmatpush1.msra.mxu0 0.0
    %406 = vmatprep.subr.mxu0 0.0
    %407 = vmatpush1.msra.mxu0 0.0
    %408 = vmatprep.subr.mxu0 0.0
    %409 = vmatpush1.msra.mxu0 0.0
    %410 = vmatprep.subr.mxu0 0.0
    %411 = vmatpush1.msra.mxu0 0.0
    %412 = vmatprep.subr.mxu0 0.0
    %413 = vmatpush1.msra.mxu0 0.0
    %414 = vmatprep.subr.mxu0 0.0
    %415 = vmatpush1.msra.mxu0 0.0
    %416 = vmatprep.subr.mxu0 0.0
    %417 = vmatpush1.msra.mxu0 0.0
    %418 = vmatprep.subr.mxu0 0.0
    %419 = vmatpush1.msra.mxu0 0.0
    %420 = vmatprep.subr.mxu0 0.0
    %421 = vmatpush1.msra.mxu0 0.0
    %422 = vmatprep.subr.mxu0 0.0
    %423 = vmatpush1.msra.mxu0 0.0
    %424 = vmatprep.subr.mxu0 0.0
    %425 = vmatpush1.msra.mxu0 0.0
    %426 = vmatprep.subr.mxu0 0.0
    %427 = vmatpush1.msra.mxu0 0.0
    %428 = vmatprep.subr.mxu0 0.0
    %429 = vmatpush1.msra.mxu0 0.0
    %430 = vmatprep.subr.mxu0 0.0
    %431 = vmatpush1.msra.mxu0 0.0
    %432 = vmatprep.subr.mxu0 0.0
    %433 = vmatpush1.msra.mxu0 0.0
    %434 = vmatprep.subr.mxu0 0.0
    %435 = vmatpush1.msra.mxu0 0.0
    %436 = vmatprep.subr.mxu0 0.0
    %437 = vmatpush1.msra.mxu0 0.0
    %438 = vmatprep.subr.mxu0 0.0
    %439 = vmatpush1.msra.mxu0 0.0
    %440 = vmatprep.subr.mxu0 0.0
    %441 = vmatpush1.msra.mxu0 0.0
    %442 = vmatprep.subr.mxu0 0.0
    %443 = vmatpush1.msra.mxu0 0.0
    %444 = vmatprep.subr.mxu0 0.0
    %445 = vmatpush1.msra.mxu0 0.0
    %446 = vmatprep.subr.mxu0 0.0
    %447 = vmatpush1.msra.mxu0 0.0
    %448 = vmatprep.mubr.f32.mxu0 0.0
    %449 = vmatmul.mubr.f32.gmra.mrb[0].mxu0 %v373
    %v450 = vpop.f32.mrb[0].mxu0
    %v451 = vadd.f32 %v371, %v450
    %v452 = vpop.f32.mrb[0].mxu0
    %453 = vmatprep.mubr.f32.mxu0 0.0
    %454 = vmatmul.mubr.f32.gmra.mrb[0].mxu0 %v376
    %v455 = vpop.f32.mrb[0].mxu0
    %v456 = vadd.f32 %v371, %v455
    %v457 = vpop.f32.mrb[0].mxu0
    %458 = vmatprep.mubr.f32.mxu0 0.0
    %459 = vmatmul.mubr.f32.gmra.mrb[0].mxu0 %v379
    %v460 = vpop.f32.mrb[0].mxu0
    %v461 = vadd.f32 %v371, %v460
    %v462 = vpop.f32.mrb[0].mxu0
    %463 = vmatprep.mubr.f32.mxu0 0.0
    %464 = vmatmul.mubr.f32.gmra.mrb[0].mxu0 %v382
    %v465 = vpop.f32.mrb[0].mxu0
    %v466 = vadd.f32 %v371, %v465
    %v467 = vpop.f32.mrb[0].mxu0
    %468 = vdwg.mxu0
    %v469 = vld [vmem:[#allocation7] sm:$0xff]
    %v470 = vld [vmem:[#allocation7 + $0x8] sm:$0x3]
    %v471 = vld [vmem:[%s5] sm:$0xff]
    %v472 = vld [vmem:[%s5 + $0x8] sm:$0xff]
    %v473 = vld [vmem:[%s5 + $0x10] sm:$0xff]
    %v474 = vld [vmem:[%s5 + $0x18] sm:$0xff]
    %v475 = vld [vmem:[#allocation8] sm:$0xff]
    %v476 = vld [vmem:[#allocation8 + $0x8] sm:$0x3]
    %v477 = vlaneseq
    %v478 = vshrl.u32 %v477, 7
    %v479 = vsub.s32 0, %v478
    %v480 = vrot.slane %v142, %v479
    %vm481 = vcmask 80896
    %v483 = vsel %vm481, %v451, 0
    %v486 = vsel %vm481, %v456, 0
    %v489 = vsel %vm481, %v461, 0
    %v492 = vsel %vm481, %v466, 0
    %vm494 = vcmask 1041408
    %v496 = vsel %vm494, %v470, 0
    %498 = vmatprep.subr.mxu0 0.0
    %499 = vmatpush1.msra.mxu0 %v469
    %500 = vmatprep.subr.mxu0 0.0
    %501 = vmatpush1.msra.mxu0 %v496
    %502 = vmatprep.subr.mxu0 0.0
    %503 = vmatpush1.msra.mxu0 0.0
    %504 = vmatprep.subr.mxu0 0.0
    %505 = vmatpush1.msra.mxu0 0.0
    %506 = vmatprep.subr.mxu0 0.0
    %507 = vmatpush1.msra.mxu0 0.0
    %508 = vmatprep.subr.mxu0 0.0
    %509 = vmatpush1.msra.mxu0 0.0
    %510 = vmatprep.subr.mxu0 0.0
    %511 = vmatpush1.msra.mxu0 0.0
    %512 = vmatprep.subr.mxu0 0.0
    %513 = vmatpush1.msra.mxu0 0.0
    %514 = vmatprep.subr.mxu0 0.0
    %515 = vmatpush1.msra.mxu0 0.0
    %516 = vmatprep.subr.mxu0 0.0
    %517 = vmatpush1.msra.mxu0 0.0
    %518 = vmatprep.subr.mxu0 0.0
    %519 = vmatpush1.msra.mxu0 0.0
    %520 = vmatprep.subr.mxu0 0.0
    %521 = vmatpush1.msra.mxu0 0.0
    %522 = vmatprep.subr.mxu0 0.0
    %523 = vmatpush1.msra.mxu0 0.0
    %524 = vmatprep.subr.mxu0 0.0
    %525 = vmatpush1.msra.mxu0 0.0
    %526 = vmatprep.subr.mxu0 0.0
    %527 = vmatpush1.msra.mxu0 0.0
    %528 = vmatprep.subr.mxu0 0.0
    %529 = vmatpush1.msra.mxu0 0.0
    %530 = vmatprep.subr.mxu0 0.0
    %531 = vmatpush1.msra.mxu0 0.0
    %532 = vmatprep.subr.mxu0 0.0
    %533 = vmatpush1.msra.mxu0 0.0
    %534 = vmatprep.subr.mxu0 0.0
    %535 = vmatpush1.msra.mxu0 0.0
    %536 = vmatprep.subr.mxu0 0.0
    %537 = vmatpush1.msra.mxu0 0.0
    %538 = vmatprep.subr.mxu0 0.0
    %539 = vmatpush1.msra.mxu0 0.0
    %540 = vmatprep.subr.mxu0 0.0
    %541 = vmatpush1.msra.mxu0 0.0
    %542 = vmatprep.subr.mxu0 0.0
    %543 = vmatpush1.msra.mxu0 0.0
    %544 = vmatprep.subr.mxu0 0.0
    %545 = vmatpush1.msra.mxu0 0.0
    %546 = vmatprep.subr.mxu0 0.0
    %547 = vmatpush1.msra.mxu0 0.0
    %548 = vmatprep.subr.mxu0 0.0
    %549 = vmatpush1.msra.mxu0 0.0
    %550 = vmatprep.subr.mxu0 0.0
    %551 = vmatpush1.msra.mxu0 0.0
    %552 = vmatprep.subr.mxu0 0.0
    %553 = vmatpush1.msra.mxu0 0.0
    %554 = vmatprep.subr.mxu0 0.0
    %555 = vmatpush1.msra.mxu0 0.0
    %556 = vmatprep.subr.mxu0 0.0
    %557 = vmatpush1.msra.mxu0 0.0
    %558 = vmatprep.subr.mxu0 0.0
    %559 = vmatpush1.msra.mxu0 0.0
    %560 = vmatprep.subr.mxu0 0.0
    %561 = vmatpush1.msra.mxu0 0.0
    %562 = vmatprep.mubr.f32.mxu0 0.0
    %563 = vmatmul.mubr.f32.gmra.mrb[0].mxu0 %v483
    %v564 = vpop.f32.mrb[0].mxu0
    %v565 = vadd.f32 %v480, %v564
    %v566 = vpop.f32.mrb[0].mxu0
    %567 = vmatprep.mubr.f32.mxu0 0.0
    %568 = vmatmul.mubr.f32.gmra.mrb[0].mxu0 %v486
    %v569 = vpop.f32.mrb[0].mxu0
    %v570 = vadd.f32 %v480, %v569
    %v571 = vpop.f32.mrb[0].mxu0
    %572 = vmatprep.mubr.f32.mxu0 0.0
    %573 = vmatmul.mubr.f32.gmra.mrb[0].mxu0 %v489
    %v574 = vpop.f32.mrb[0].mxu0
    %v575 = vadd.f32 %v480, %v574
    %v576 = vpop.f32.mrb[0].mxu0
    %577 = vmatprep.mubr.f32.mxu0 0.0
    %578 = vmatmul.mubr.f32.gmra.mrb[0].mxu0 %v492
    %v579 = vpop.f32.mrb[0].mxu0
    %v580 = vadd.f32 %v480, %v579
    %v581 = vpop.f32.mrb[0].mxu0
    %582 = vdwg.mxu0
    %v583 = vtanh.pop %v565
    %v584 = vtanh.pop %v570
    %v585 = vtanh.pop %v575
    %v586 = vtanh.pop %v580
    %v587 = vsel %vm262, %v583, 0.0
    %v588 = vsel %vm262, %v584, 0.0
    %v589 = vadd.f32 %v587, %v588
    %v590 = vsel %vm262, %v585, 0.0
    %v591 = vadd.f32 %v589, %v590
    %v592 = vsel %vm262, %v586, 0.0
    %v593 = vadd.f32 %v591, %v592
    %v594 = vsub.f32 %v593, %v583
    %v595 = vsub.f32 %v593, %v584
    %v596 = vsub.f32 %v593, %v585
    %v597 = vsub.f32 %v593, %v586
    %v598 = vmul.f32 %v594, 0.33333334
    %v599 = vmul.f32 %v595, 0.33333334
    %v600 = vmul.f32 %v596, 0.33333334
    %v601 = vmul.f32 %v597, 0.33333334
    %v603 = vsel %vm494, %v476, 0
    %605 = vmatprep.subr.mxu0 0.0
    %606 = vmatpush1.msra.mxu0 %v475
    %607 = vmatprep.subr.mxu0 0.0
    %608 = vmatpush1.msra.mxu0 %v603
    %609 = vmatprep.subr.mxu0 0.0
    %610 = vmatpush1.msra.mxu0 0.0
    %611 = vmatprep.subr.mxu0 0.0
    %612 = vmatpush1.msra.mxu0 0.0
    %613 = vmatprep.subr.mxu0 0.0
    %614 = vmatpush1.msra.mxu0 0.0
    %615 = vmatprep.subr.mxu0 0.0
    %616 = vmatpush1.msra.mxu0 0.0
    %617 = vmatprep.subr.mxu0 0.0
    %618 = vmatpush1.msra.mxu0 0.0
    %619 = vmatprep.subr.mxu0 0.0
    %620 = vmatpush1.msra.mxu0 0.0
    %621 = vmatprep.subr.mxu0 0.0
    %622 = vmatpush1.msra.mxu0 0.0
    %623 = vmatprep.subr.mxu0 0.0
    %624 = vmatpush1.msra.mxu0 0.0
    %625 = vmatprep.subr.mxu0 0.0
    %626 = vmatpush1.msra.mxu0 0.0
    %627 = vmatprep.subr.mxu0 0.0
    %628 = vmatpush1.msra.mxu0 0.0
    %629 = vmatprep.subr.mxu0 0.0
    %630 = vmatpush1.msra.mxu0 0.0
    %631 = vmatprep.subr.mxu0 0.0
    %632 = vmatpush1.msra.mxu0 0.0
    %633 = vmatprep.subr.mxu0 0.0
    %634 = vmatpush1.msra.mxu0 0.0
    %635 = vmatprep.subr.mxu0 0.0
    %636 = vmatpush1.msra.mxu0 0.0
    %637 = vmatprep.subr.mxu0 0.0
    %638 = vmatpush1.msra.mxu0 0.0
    %639 = vmatprep.subr.mxu0 0.0
    %640 = vmatpush1.msra.mxu0 0.0
    %641 = vmatprep.subr.mxu0 0.0
    %642 = vmatpush1.msra.mxu0 0.0
    %643 = vmatprep.subr.mxu0 0.0
    %644 = vmatpush1.msra.mxu0 0.0
    %645 = vmatprep.subr.mxu0 0.0
    %646 = vmatpush1.msra.mxu0 0.0
    %647 = vmatprep.subr.mxu0 0.0
    %648 = vmatpush1.msra.mxu0 0.0
    %649 = vmatprep.subr.mxu0 0.0
    %650 = vmatpush1.msra.mxu0 0.0
    %651 = vmatprep.subr.mxu0 0.0
    %652 = vmatpush1.msra.mxu0 0.0
    %653 = vmatprep.subr.mxu0 0.0
    %654 = vmatpush1.msra.mxu0 0.0
    %655 = vmatprep.subr.mxu0 0.0
    %656 = vmatpush1.msra.mxu0 0.0
    %657 = vmatprep.subr.mxu0 0.0
    %658 = vmatpush1.msra.mxu0 0.0
    %659 = vmatprep.subr.mxu0 0.0
    %660 = vmatpush1.msra.mxu0 0.0
    %661 = vmatprep.subr.mxu0 0.0
    %662 = vmatpush1.msra.mxu0 0.0
    %663 = vmatprep.subr.mxu0 0.0
    %664 = vmatpush1.msra.mxu0 0.0
    %665 = vmatprep.subr.mxu0 0.0
    %666 = vmatpush1.msra.mxu0 0.0
    %667 = vmatprep.subr.mxu0 0.0
    %668 = vmatpush1.msra.mxu0 0.0
    %669 = vmatprep.mubr.f32.mxu0 0.0
    %670 = vmatmul.mubr.f32.gmra.mrb[0].mxu0 %v483
    %v671 = vpop.f32.mrb[0].mxu0
    %v672 = vadd.f32 0.0, %v671
    %v673 = vpop.f32.mrb[0].mxu0
    %674 = vmatprep.mubr.f32.mxu0 0.0
    %675 = vmatmul.mubr.f32.gmra.mrb[0].mxu0 %v486
    %v676 = vpop.f32.mrb[0].mxu0
    %v677 = vadd.f32 0.0, %v676
    %v678 = vpop.f32.mrb[0].mxu0
    %679 = vmatprep.mubr.f32.mxu0 0.0
    %680 = vmatmul.mubr.f32.gmra.mrb[0].mxu0 %v489
    %v681 = vpop.f32.mrb[0].mxu0
    %v682 = vadd.f32 0.0, %v681
    %v683 = vpop.f32.mrb[0].mxu0
    %684 = vmatprep.mubr.f32.mxu0 0.0
    %685 = vmatmul.mubr.f32.gmra.mrb[0].mxu0 %v492
    %v686 = vpop.f32.mrb[0].mxu0
    %v687 = vadd.f32 0.0, %v686
    %v688 = vpop.f32.mrb[0].mxu0
    %689 = vdwg.mxu0
    %v691 = vsel %vm262, %v598, 0
    %v694 = vsel %vm262, %v599, 0
    %v697 = vsel %vm262, %v600, 0
    %v700 = vsel %vm262, %v601, 0
    %702 = vmatprep.subr.mxu0 0.0
    %703 = vmatpush1.msra.mxu0 %v471
    %704 = vmatprep.subr.mxu0 0.0
    %705 = vmatpush1.msra.mxu0 %v472
    %706 = vmatprep.subr.mxu0 0.0
    %707 = vmatpush1.msra.mxu0 %v473
    %708 = vmatprep.subr.mxu0 0.0
    %709 = vmatpush1.msra.mxu0 %v474
    %710 = vmatprep.subr.mxu0 0.0
    %711 = vmatpush1.msra.mxu0 0.0
    %712 = vmatprep.subr.mxu0 0.0
    %713 = vmatpush1.msra.mxu0 0.0
    %714 = vmatprep.subr.mxu0 0.0
    %715 = vmatpush1.msra.mxu0 0.0
    %716 = vmatprep.subr.mxu0 0.0
    %717 = vmatpush1.msra.mxu0 0.0
    %718 = vmatprep.subr.mxu0 0.0
    %719 = vmatpush1.msra.mxu0 0.0
    %720 = vmatprep.subr.mxu0 0.0
    %721 = vmatpush1.msra.mxu0 0.0
    %722 = vmatprep.subr.mxu0 0.0
    %723 = vmatpush1.msra.mxu0 0.0
    %724 = vmatprep.subr.mxu0 0.0
    %725 = vmatpush1.msra.mxu0 0.0
    %726 = vmatprep.subr.mxu0 0.0
    %727 = vmatpush1.msra.mxu0 0.0
    %728 = vmatprep.subr.mxu0 0.0
    %729 = vmatpush1.msra.mxu0 0.0
    %730 = vmatprep.subr.mxu0 0.0
    %731 = vmatpush1.msra.mxu0 0.0
    %732 = vmatprep.subr.mxu0 0.0
    %733 = vmatpush1.msra.mxu0 0.0
    %734 = vmatprep.subr.mxu0 0.0
    %735 = vmatpush1.msra.mxu0 0.0
    %736 = vmatprep.subr.mxu0 0.0
    %737 = vmatpush1.msra.mxu0 0.0
    %738 = vmatprep.subr.mxu0 0.0
    %739 = vmatpush1.msra.mxu0 0.0
    %740 = vmatprep.subr.mxu0 0.0
    %741 = vmatpush1.msra.mxu0 0.0
    %742 = vmatprep.subr.mxu0 0.0
    %743 = vmatpush1.msra.mxu0 0.0
    %744 = vmatprep.subr.mxu0 0.0
    %745 = vmatpush1.msra.mxu0 0.0
    %746 = vmatprep.subr.mxu0 0.0
    %747 = vmatpush1.msra.mxu0 0.0
    %748 = vmatprep.subr.mxu0 0.0
    %749 = vmatpush1.msra.mxu0 0.0
    %750 = vmatprep.subr.mxu0 0.0
    %751 = vmatpush1.msra.mxu0 0.0
    %752 = vmatprep.subr.mxu0 0.0
    %753 = vmatpush1.msra.mxu0 0.0
    %754 = vmatprep.subr.mxu0 0.0
    %755 = vmatpush1.msra.mxu0 0.0
    %756 = vmatprep.subr.mxu0 0.0
    %757 = vmatpush1.msra.mxu0 0.0
    %758 = vmatprep.subr.mxu0 0.0
    %759 = vmatpush1.msra.mxu0 0.0
    %760 = vmatprep.subr.mxu0 0.0
    %761 = vmatpush1.msra.mxu0 0.0
    %762 = vmatprep.subr.mxu0 0.0
    %763 = vmatpush1.msra.mxu0 0.0
    %764 = vmatprep.subr.mxu0 0.0
    %765 = vmatpush1.msra.mxu0 0.0
    %766 = vmatprep.mubr.f32.mxu0 0.0
    %767 = vmatmul.mubr.f32.gmra.mrb[0].mxu0 %v691
    %v768 = vpop.f32.mrb[0].mxu0
    %v769 = vadd.f32 %v672, %v768
    %v770 = vpop.f32.mrb[0].mxu0
    %771 = vmatprep.mubr.f32.mxu0 0.0
    %772 = vmatmul.mubr.f32.gmra.mrb[0].mxu0 %v694
    %v773 = vpop.f32.mrb[0].mxu0
    %v774 = vadd.f32 %v677, %v773
    %v775 = vpop.f32.mrb[0].mxu0
    %776 = vmatprep.mubr.f32.mxu0 0.0
    %777 = vmatmul.mubr.f32.gmra.mrb[0].mxu0 %v697
    %v778 = vpop.f32.mrb[0].mxu0
    %v779 = vadd.f32 %v682, %v778
    %v780 = vpop.f32.mrb[0].mxu0
    %781 = vmatprep.mubr.f32.mxu0 0.0
    %782 = vmatmul.mubr.f32.gmra.mrb[0].mxu0 %v700
    %v783 = vpop.f32.mrb[0].mxu0
    %v784 = vadd.f32 %v687, %v783
    %v785 = vpop.f32.mrb[0].mxu0
    %786 = vdwg.mxu0
    %v787 = vlaneseq
    %v788 = vshrl.u32 %v787, 7
    %v789 = vsub.s32 0, %v788
    %v790 = vrot.slane %v143, %v789
    %v791 = vadd.f32 %v769, %v790
    %v792 = vadd.f32 %v774, %v790
    %v793 = vadd.f32 %v779, %v790
    %v794 = vadd.f32 %v784, %v790
    %v795 = vxor.u32 %v791, 2147483648
    %v796 = vxor.u32 %v792, 2147483648
    %v797 = vxor.u32 %v793, 2147483648
    %v798 = vxor.u32 %v794, 2147483648
    %v799 = vmul.f32 %v795, 1.442695
    %v800 = vpow.pop %v799
    %v801 = vmul.f32 %v796, 1.442695
    %v802 = vpow.pop %v801
    %v803 = vmul.f32 %v797, 1.442695
    %v804 = vpow.pop %v803
    %v805 = vmul.f32 %v798, 1.442695
    %v806 = vpow.pop %v805
    %v807 = vadd.f32 %v800, 1.0
    %v808 = vadd.f32 %v802, 1.0
    %v809 = vadd.f32 %v804, 1.0
    %v810 = vadd.f32 %v806, 1.0
    %v811 = vrcp.pop %v807
    %v812 = vmul.f32 1.0, %v811
    %v813 = vrcp.pop %v808
    %v814 = vmul.f32 1.0, %v813
    %v815 = vrcp.pop %v809
    %v816 = vmul.f32 1.0, %v815
    %v817 = vrcp.pop %v810
    %v818 = vmul.f32 1.0, %v817
    %v819 = vtanh.pop %v791
    %v820 = vtanh.pop %v792
    %v821 = vtanh.pop %v793
    %v822 = vtanh.pop %v794
    %v823 = vmul.f32 %v812, 0.0
    %v824 = vmul.f32 %v814, 0.0
    %v825 = vmul.f32 %v816, 0.0
    %v826 = vmul.f32 %v818, 0.0
    %831 = vrot.lane.b32.xlu0 %v819, 108
    %v832 = vpop.permute.xlu0 %831
    %833 = vrot.lane.b32.xlu0 %v820, 108
    %v834 = vpop.permute.xlu0 %833
    %835 = vrot.lane.b32.xlu0 %v821, 108
    %v836 = vpop.permute.xlu0 %835
    %837 = vrot.lane.b32.xlu0 %v822, 108
    %v838 = vpop.permute.xlu0 %837
    %v843 = vmul.f32 %v812, %v832
    %v844 = vmul.f32 %v814, %v834
    %v845 = vmul.f32 %v816, %v836
    %v846 = vmul.f32 %v818, %v838
    %851 = vrot.lane.b32.xlu0 %v843, 10
    %v852 = vpop.permute.xlu0 %851
    %853 = vrot.lane.b32.xlu0 %v844, 10
    %v854 = vpop.permute.xlu0 %853
    %855 = vrot.lane.b32.xlu0 %v845, 10
    %v856 = vpop.permute.xlu0 %855
    %857 = vrot.lane.b32.xlu0 %v846, 10
    %v858 = vpop.permute.xlu0 %857
    %v863 = vadd.f32 %v823, %v852
    %v864 = vadd.f32 %v824, %v854
    %v865 = vadd.f32 %v825, %v856
    %v866 = vadd.f32 %v826, %v858
    %v867 = vtanh.pop %v863
    %v868 = vtanh.pop %v864
    %v869 = vtanh.pop %v865
    %v870 = vtanh.pop %v866
    %875 = vrot.lane.b32.xlu0 %v867, 20
    %v876 = vpop.permute.xlu0 %875
    %877 = vrot.lane.b32.xlu0 %v868, 20
    %v878 = vpop.permute.xlu0 %877
    %879 = vrot.lane.b32.xlu0 %v869, 20
    %v880 = vpop.permute.xlu0 %879
    %881 = vrot.lane.b32.xlu0 %v870, 20
    %v882 = vpop.permute.xlu0 %881
    %v887 = vmul.f32 %v812, %v876
    %v888 = vmul.f32 %v814, %v878
    %v889 = vmul.f32 %v816, %v880
    %v890 = vmul.f32 %v818, %v882
    %895 = vrot.lane.b32.xlu0 %v887, 98
    %v896 = vpop.permute.xlu0 %895
    %897 = vrot.lane.b32.xlu0 %v888, 98
    %v898 = vpop.permute.xlu0 %897
    %899 = vrot.lane.b32.xlu0 %v889, 98
    %v900 = vpop.permute.xlu0 %899
    %901 = vrot.lane.b32.xlu0 %v890, 98
    %v902 = vpop.permute.xlu0 %901
    %v903 = vsel %vm481, %v896, 0
    %v905 = vsel %vm481, %v898, 0
    %v907 = vsel %vm481, %v900, 0
    %v909 = vsel %vm481, %v902, 0
    %911 = vmatprep.subr.mxu0 0.0
    %912 = vmatpush1.msra.mxu0 %v469
    %913 = vmatprep.subr.mxu0 0.0
    %914 = vmatpush1.msra.mxu0 %v496
    %915 = vmatprep.subr.mxu0 0.0
    %916 = vmatpush1.msra.mxu0 0.0
    %917 = vmatprep.subr.mxu0 0.0
    %918 = vmatpush1.msra.mxu0 0.0
    %919 = vmatprep.subr.mxu0 0.0
    %920 = vmatpush1.msra.mxu0 0.0
    %921 = vmatprep.subr.mxu0 0.0
    %922 = vmatpush1.msra.mxu0 0.0
    %923 = vmatprep.subr.mxu0 0.0
    %924 = vmatpush1.msra.mxu0 0.0
    %925 = vmatprep.subr.mxu0 0.0
    %926 = vmatpush1.msra.mxu0 0.0
    %927 = vmatprep.subr.mxu0 0.0
    %928 = vmatpush1.msra.mxu0 0.0
    %929 = vmatprep.subr.mxu0 0.0
    %930 = vmatpush1.msra.mxu0 0.0
    %931 = vmatprep.subr.mxu0 0.0
    %932 = vmatpush1.msra.mxu0 0.0
    %933 = vmatprep.subr.mxu0 0.0
    %934 = vmatpush1.msra.mxu0 0.0
    %935 = vmatprep.subr.mxu0 0.0
    %936 = vmatpush1.msra.mxu0 0.0
    %937 = vmatprep.subr.mxu0 0.0
    %938 = vmatpush1.msra.mxu0 0.0
    %939 = vmatprep.subr.mxu0 0.0
    %940 = vmatpush1.msra.mxu0 0.0
    %941 = vmatprep.subr.mxu0 0.0
    %942 = vmatpush1.msra.mxu0 0.0
    %943 = vmatprep.subr.mxu0 0.0
    %944 = vmatpush1.msra.mxu0 0.0
    %945 = vmatprep.subr.mxu0 0.0
    %946 = vmatpush1.msra.mxu0 0.0
    %947 = vmatprep.subr.mxu0 0.0
    %948 = vmatpush1.msra.mxu0 0.0
    %949 = vmatprep.subr.mxu0 0.0
    %950 = vmatpush1.msra.mxu0 0.0
    %951 = vmatprep.subr.mxu0 0.0
    %952 = vmatpush1.msra.mxu0 0.0
    %953 = vmatprep.subr.mxu0 0.0
    %954 = vmatpush1.msra.mxu0 0.0
    %955 = vmatprep.subr.mxu0 0.0
    %956 = vmatpush1.msra.mxu0 0.0
    %957 = vmatprep.subr.mxu0 0.0
    %958 = vmatpush1.msra.mxu0 0.0
    %959 = vmatprep.subr.mxu0 0.0
    %960 = vmatpush1.msra.mxu0 0.0
    %961 = vmatprep.subr.mxu0 0.0
    %962 = vmatpush1.msra.mxu0 0.0
    %963 = vmatprep.subr.mxu0 0.0
    %964 = vmatpush1.msra.mxu0 0.0
    %965 = vmatprep.subr.mxu0 0.0
    %966 = vmatpush1.msra.mxu0 0.0
    %967 = vmatprep.subr.mxu0 0.0
    %968 = vmatpush1.msra.mxu0 0.0
    %969 = vmatprep.subr.mxu0 0.0
    %970 = vmatpush1.msra.mxu0 0.0
    %971 = vmatprep.subr.mxu0 0.0
    %972 = vmatpush1.msra.mxu0 0.0
    %973 = vmatprep.subr.mxu0 0.0
    %974 = vmatpush1.msra.mxu0 0.0
    %975 = vmatprep.mubr.f32.mxu0 0.0
    %976 = vmatmul.mubr.f32.gmra.mrb[0].mxu0 %v903
    %v977 = vpop.f32.mrb[0].mxu0
    %v978 = vadd.f32 %v480, %v977
    %v979 = vpop.f32.mrb[0].mxu0
    %980 = vmatprep.mubr.f32.mxu0 0.0
    %981 = vmatmul.mubr.f32.gmra.mrb[0].mxu0 %v905
    %v982 = vpop.f32.mrb[0].mxu0
    %v983 = vadd.f32 %v480, %v982
    %v984 = vpop.f32.mrb[0].mxu0
    %985 = vmatprep.mubr.f32.mxu0 0.0
    %986 = vmatmul.mubr.f32.gmra.mrb[0].mxu0 %v907
    %v987 = vpop.f32.mrb[0].mxu0
    %v988 = vadd.f32 %v480, %v987
    %v989 = vpop.f32.mrb[0].mxu0
    %990 = vmatprep.mubr.f32.mxu0 0.0
    %991 = vmatmul.mubr.f32.gmra.mrb[0].mxu0 %v909
    %v992 = vpop.f32.mrb[0].mxu0
    %v993 = vadd.f32 %v480, %v992
    %v994 = vpop.f32.mrb[0].mxu0
    %995 = vdwg.mxu0
    %v996 = vtanh.pop %v978
    %v997 = vtanh.pop %v983
    %v998 = vtanh.pop %v988
    %v999 = vtanh.pop %v993
    %v1000 = vsel %vm262, %v996, 0.0
    %v1001 = vsel %vm262, %v997, 0.0
    %v1002 = vadd.f32 %v1000, %v1001
    %v1003 = vsel %vm262, %v998, 0.0
    %v1004 = vadd.f32 %v1002, %v1003
    %v1005 = vsel %vm262, %v999, 0.0
    %v1006 = vadd.f32 %v1004, %v1005
    %v1007 = vsub.f32 %v1006, %v996
    %v1008 = vsub.f32 %v1006, %v997
    %v1009 = vsub.f32 %v1006, %v998
    %v1010 = vsub.f32 %v1006, %v999
    %v1011 = vmul.f32 %v1007, 0.33333334
    %v1012 = vmul.f32 %v1008, 0.33333334
    %v1013 = vmul.f32 %v1009, 0.33333334
    %v1014 = vmul.f32 %v1010, 0.33333334
    %1015 = vmatprep.subr.mxu0 0.0
    %1016 = vmatpush1.msra.mxu0 %v475
    %1017 = vmatprep.subr.mxu0 0.0
    %1018 = vmatpush1.msra.mxu0 %v603
    %1019 = vmatprep.subr.mxu0 0.0
    %1020 = vmatpush1.msra.mxu0 0.0
    %1021 = vmatprep.subr.mxu0 0.0
    %1022 = vmatpush1.msra.mxu0 0.0
    %1023 = vmatprep.subr.mxu0 0.0
    %1024 = vmatpush1.msra.mxu0 0.0
    %1025 = vmatprep.subr.mxu0 0.0
    %1026 = vmatpush1.msra.mxu0 0.0
    %1027 = vmatprep.subr.mxu0 0.0
    %1028 = vmatpush1.msra.mxu0 0.0
    %1029 = vmatprep.subr.mxu0 0.0
    %1030 = vmatpush1.msra.mxu0 0.0
    %1031 = vmatprep.subr.mxu0 0.0
    %1032 = vmatpush1.msra.mxu0 0.0
    %1033 = vmatprep.subr.mxu0 0.0
    %1034 = vmatpush1.msra.mxu0 0.0
    %1035 = vmatprep.subr.mxu0 0.0
    %1036 = vmatpush1.msra.mxu0 0.0
    %1037 = vmatprep.subr.mxu0 0.0
    %1038 = vmatpush1.msra.mxu0 0.0
    %1039 = vmatprep.subr.mxu0 0.0
    %1040 = vmatpush1.msra.mxu0 0.0
    %1041 = vmatprep.subr.mxu0 0.0
    %1042 = vmatpush1.msra.mxu0 0.0
    %1043 = vmatprep.subr.mxu0 0.0
    %1044 = vmatpush1.msra.mxu0 0.0
    %1045 = vmatprep.subr.mxu0 0.0
    %1046 = vmatpush1.msra.mxu0 0.0
    %1047 = vmatprep.subr.mxu0 0.0
    %1048 = vmatpush1.msra.mxu0 0.0
    %1049 = vmatprep.subr.mxu0 0.0
    %1050 = vmatpush1.msra.mxu0 0.0
    %1051 = vmatprep.subr.mxu0 0.0
    %1052 = vmatpush1.msra.mxu0 0.0
    %1053 = vmatprep.subr.mxu0 0.0
    %1054 = vmatpush1.msra.mxu0 0.0
    %1055 = vmatprep.subr.mxu0 0.0
    %1056 = vmatpush1.msra.mxu0 0.0
    %1057 = vmatprep.subr.mxu0 0.0
    %1058 = vmatpush1.msra.mxu0 0.0
    %1059 = vmatprep.subr.mxu0 0.0
    %1060 = vmatpush1.msra.mxu0 0.0
    %1061 = vmatprep.subr.mxu0 0.0
    %1062 = vmatpush1.msra.mxu0 0.0
    %1063 = vmatprep.subr.mxu0 0.0
    %1064 = vmatpush1.msra.mxu0 0.0
    %1065 = vmatprep.subr.mxu0 0.0
    %1066 = vmatpush1.msra.mxu0 0.0
    %1067 = vmatprep.subr.mxu0 0.0
    %1068 = vmatpush1.msra.mxu0 0.0
    %1069 = vmatprep.subr.mxu0 0.0
    %1070 = vmatpush1.msra.mxu0 0.0
    %1071 = vmatprep.subr.mxu0 0.0
    %1072 = vmatpush1.msra.mxu0 0.0
    %1073 = vmatprep.subr.mxu0 0.0
    %1074 = vmatpush1.msra.mxu0 0.0
    %1075 = vmatprep.subr.mxu0 0.0
    %1076 = vmatpush1.msra.mxu0 0.0
    %1077 = vmatprep.subr.mxu0 0.0
    %1078 = vmatpush1.msra.mxu0 0.0
    %1079 = vmatprep.mubr.f32.mxu0 0.0
    %1080 = vmatmul.mubr.f32.gmra.mrb[0].mxu0 %v903
    %v1081 = vpop.f32.mrb[0].mxu0
    %v1082 = vadd.f32 0.0, %v1081
    %v1083 = vpop.f32.mrb[0].mxu0
    %1084 = vmatprep.mubr.f32.mxu0 0.0
    %1085 = vmatmul.mubr.f32.gmra.mrb[0].mxu0 %v905
    %v1086 = vpop.f32.mrb[0].mxu0
    %v1087 = vadd.f32 0.0, %v1086
    %v1088 = vpop.f32.mrb[0].mxu0
    %1089 = vmatprep.mubr.f32.mxu0 0.0
    %1090 = vmatmul.mubr.f32.gmra.mrb[0].mxu0 %v907
    %v1091 = vpop.f32.mrb[0].mxu0
    %v1092 = vadd.f32 0.0, %v1091
    %v1093 = vpop.f32.mrb[0].mxu0
    %1094 = vmatprep.mubr.f32.mxu0 0.0
    %1095 = vmatmul.mubr.f32.gmra.mrb[0].mxu0 %v909
    %v1096 = vpop.f32.mrb[0].mxu0
    %v1097 = vadd.f32 0.0, %v1096
    %v1098 = vpop.f32.mrb[0].mxu0
    %1099 = vdwg.mxu0
    %v1101 = vsel %vm262, %v1011, 0
    %v1104 = vsel %vm262, %v1012, 0
    %v1107 = vsel %vm262, %v1013, 0
    %v1110 = vsel %vm262, %v1014, 0
    %1112 = vmatprep.subr.mxu0 0.0
    %1113 = vmatpush1.msra.mxu0 %v471
    %1114 = vmatprep.subr.mxu0 0.0
    %1115 = vmatpush1.msra.mxu0 %v472
    %1116 = vmatprep.subr.mxu0 0.0
    %1117 = vmatpush1.msra.mxu0 %v473
    %1118 = vmatprep.subr.mxu0 0.0
    %1119 = vmatpush1.msra.mxu0 %v474
    %1120 = vmatprep.subr.mxu0 0.0
    %1121 = vmatpush1.msra.mxu0 0.0
    %1122 = vmatprep.subr.mxu0 0.0
    %1123 = vmatpush1.msra.mxu0 0.0
    %1124 = vmatprep.subr.mxu0 0.0
    %1125 = vmatpush1.msra.mxu0 0.0
    %1126 = vmatprep.subr.mxu0 0.0
    %1127 = vmatpush1.msra.mxu0 0.0
    %1128 = vmatprep.subr.mxu0 0.0
    %1129 = vmatpush1.msra.mxu0 0.0
    %1130 = vmatprep.subr.mxu0 0.0
    %1131 = vmatpush1.msra.mxu0 0.0
    %1132 = vmatprep.subr.mxu0 0.0
    %1133 = vmatpush1.msra.mxu0 0.0
    %1134 = vmatprep.subr.mxu0 0.0
    %1135 = vmatpush1.msra.mxu0 0.0
    %1136 = vmatprep.subr.mxu0 0.0
    %1137 = vmatpush1.msra.mxu0 0.0
    %1138 = vmatprep.subr.mxu0 0.0
    %1139 = vmatpush1.msra.mxu0 0.0
    %1140 = vmatprep.subr.mxu0 0.0
    %1141 = vmatpush1.msra.mxu0 0.0
    %1142 = vmatprep.subr.mxu0 0.0
    %1143 = vmatpush1.msra.mxu0 0.0
    %1144 = vmatprep.subr.mxu0 0.0
    %1145 = vmatpush1.msra.mxu0 0.0
    %1146 = vmatprep.subr.mxu0 0.0
    %1147 = vmatpush1.msra.mxu0 0.0
    %1148 = vmatprep.subr.mxu0 0.0
    %1149 = vmatpush1.msra.mxu0 0.0
    %1150 = vmatprep.subr.mxu0 0.0
    %1151 = vmatpush1.msra.mxu0 0.0
    %1152 = vmatprep.subr.mxu0 0.0
    %1153 = vmatpush1.msra.mxu0 0.0
    %1154 = vmatprep.subr.mxu0 0.0
    %1155 = vmatpush1.msra.mxu0 0.0
    %1156 = vmatprep.subr.mxu0 0.0
    %1157 = vmatpush1.msra.mxu0 0.0
    %1158 = vmatprep.subr.mxu0 0.0
    %1159 = vmatpush1.msra.mxu0 0.0
    %1160 = vmatprep.subr.mxu0 0.0
    %1161 = vmatpush1.msra.mxu0 0.0
    %1162 = vmatprep.subr.mxu0 0.0
    %1163 = vmatpush1.msra.mxu0 0.0
    %1164 = vmatprep.subr.mxu0 0.0
    %1165 = vmatpush1.msra.mxu0 0.0
    %1166 = vmatprep.subr.mxu0 0.0
    %1167 = vmatpush1.msra.mxu0 0.0
    %1168 = vmatprep.subr.mxu0 0.0
    %1169 = vmatpush1.msra.mxu0 0.0
    %1170 = vmatprep.subr.mxu0 0.0
    %1171 = vmatpush1.msra.mxu0 0.0
    %1172 = vmatprep.subr.mxu0 0.0
    %1173 = vmatpush1.msra.mxu0 0.0
    %1174 = vmatprep.subr.mxu0 0.0
    %1175 = vmatpush1.msra.mxu0 0.0
    %1176 = vmatprep.mubr.f32.mxu0 0.0
    %1177 = vmatmul.mubr.f32.gmra.mrb[0].mxu0 %v1101
    %v1178 = vpop.f32.mrb[0].mxu0
    %v1179 = vadd.f32 %v1082, %v1178
    %v1180 = vpop.f32.mrb[0].mxu0
    %1181 = vmatprep.mubr.f32.mxu0 0.0
    %1182 = vmatmul.mubr.f32.gmra.mrb[0].mxu0 %v1104
    %v1183 = vpop.f32.mrb[0].mxu0
    %v1184 = vadd.f32 %v1087, %v1183
    %v1185 = vpop.f32.mrb[0].mxu0
    %1186 = vmatprep.mubr.f32.mxu0 0.0
    %1187 = vmatmul.mubr.f32.gmra.mrb[0].mxu0 %v1107
    %v1188 = vpop.f32.mrb[0].mxu0
    %v1189 = vadd.f32 %v1092, %v1188
    %v1190 = vpop.f32.mrb[0].mxu0
    %1191 = vmatprep.mubr.f32.mxu0 0.0
    %1192 = vmatmul.mubr.f32.gmra.mrb[0].mxu0 %v1110
    %v1193 = vpop.f32.mrb[0].mxu0
    %v1194 = vadd.f32 %v1097, %v1193
    %v1195 = vpop.f32.mrb[0].mxu0
    %1196 = vdwg.mxu0
    %v1197 = vadd.f32 %v1179, %v790
    %v1198 = vadd.f32 %v1184, %v790
    %v1199 = vadd.f32 %v1189, %v790
    %v1200 = vadd.f32 %v1194, %v790
    %v1201 = vxor.u32 %v1197, 2147483648
    %v1202 = vxor.u32 %v1198, 2147483648
    %v1203 = vxor.u32 %v1199, 2147483648
    %v1204 = vxor.u32 %v1200, 2147483648
    %v1205 = vmul.f32 %v1201, 1.442695
    %v1206 = vpow.pop %v1205
    %v1207 = vmul.f32 %v1202, 1.442695
    %v1208 = vpow.pop %v1207
    %v1209 = vmul.f32 %v1203, 1.442695
    %v1210 = vpow.pop %v1209
    %v1211 = vmul.f32 %v1204, 1.442695
    %v1212 = vpow.pop %v1211
    %v1213 = vadd.f32 %v1206, 1.0
    %v1214 = vadd.f32 %v1208, 1.0
    %v1215 = vadd.f32 %v1210, 1.0
    %v1216 = vadd.f32 %v1212, 1.0
    %v1217 = vrcp.pop %v1213
    %v1218 = vmul.f32 1.0, %v1217
    %v1219 = vrcp.pop %v1214
    %v1220 = vmul.f32 1.0, %v1219
    %v1221 = vrcp.pop %v1215
    %v1222 = vmul.f32 1.0, %v1221
    %v1223 = vrcp.pop %v1216
    %v1224 = vmul.f32 1.0, %v1223
    %v1225 = vtanh.pop %v1197
    %v1226 = vtanh.pop %v1198
    %v1227 = vtanh.pop %v1199
    %v1228 = vtanh.pop %v1200
    %v1229 = vmul.f32 %v1218, %v863
    %v1230 = vmul.f32 %v1220, %v864
    %v1231 = vmul.f32 %v1222, %v865
    %v1232 = vmul.f32 %v1224, %v866
    %1237 = vrot.lane.b32.xlu0 %v1225, 108
    %v1238 = vpop.permute.xlu0 %1237
    %1239 = vrot.lane.b32.xlu0 %v1226, 108
    %v1240 = vpop.permute.xlu0 %1239
    %1241 = vrot.lane.b32.xlu0 %v1227, 108
    %v1242 = vpop.permute.xlu0 %1241
    %1243 = vrot.lane.b32.xlu0 %v1228, 108
    %v1244 = vpop.permute.xlu0 %1243
    %v1249 = vmul.f32 %v1218, %v1238
    %v1250 = vmul.f32 %v1220, %v1240
    %v1251 = vmul.f32 %v1222, %v1242
    %v1252 = vmul.f32 %v1224, %v1244
    %1257 = vrot.lane.b32.xlu0 %v1249, 10
    %v1258 = vpop.permute.xlu0 %1257
    %1259 = vrot.lane.b32.xlu0 %v1250, 10
    %v1260 = vpop.permute.xlu0 %1259
    %1261 = vrot.lane.b32.xlu0 %v1251, 10
    %v1262 = vpop.permute.xlu0 %1261
    %1263 = vrot.lane.b32.xlu0 %v1252, 10
    %v1264 = vpop.permute.xlu0 %1263
    %v1269 = vadd.f32 %v1229, %v1258
    %v1270 = vadd.f32 %v1230, %v1260
    %v1271 = vadd.f32 %v1231, %v1262
    %v1272 = vadd.f32 %v1232, %v1264
    %v1273 = vtanh.pop %v1269
    %v1274 = vtanh.pop %v1270
    %v1275 = vtanh.pop %v1271
    %v1276 = vtanh.pop %v1272
    %1281 = vrot.lane.b32.xlu0 %v1273, 20
    %v1282 = vpop.permute.xlu0 %1281
    %1283 = vrot.lane.b32.xlu0 %v1274, 20
    %v1284 = vpop.permute.xlu0 %1283
    %1285 = vrot.lane.b32.xlu0 %v1275, 20
    %v1286 = vpop.permute.xlu0 %1285
    %1287 = vrot.lane.b32.xlu0 %v1276, 20
    %v1288 = vpop.permute.xlu0 %1287
    %v1293 = vmul.f32 %v1218, %v1282
    %v1294 = vmul.f32 %v1220, %v1284
    %v1295 = vmul.f32 %v1222, %v1286
    %v1296 = vmul.f32 %v1224, %v1288
    %v1297 = vld [vmem:[%s7] sm:$0xff]
    %v1298 = vld [vmem:[#allocation10] sm:$0xff]
    %v1299 = vld [vmem:[#allocation10 + $0x8] sm:$0x3]
    %1304 = vrot.lane.b32.xlu0 %v1293, 98
    %v1305 = vpop.permute.xlu0 %1304
    %1306 = vrot.lane.b32.xlu0 %v1294, 98
    %v1307 = vpop.permute.xlu0 %1306
    %1308 = vrot.lane.b32.xlu0 %v1295, 98
    %v1309 = vpop.permute.xlu0 %1308
    %1310 = vrot.lane.b32.xlu0 %v1296, 98
    %v1311 = vpop.permute.xlu0 %1310
    %v1312 = vsel %vm481, %v1305, 0
    %v1314 = vsel %vm481, %v1307, 0
    %v1316 = vsel %vm481, %v1309, 0
    %v1318 = vsel %vm481, %v1311, 0
    %v1321 = vsel %vm494, %v1299, 0
    %1323 = vmatprep.subr.mxu0 0.0
    %1324 = vmatpush1.msra.mxu0 %v1298
    %1325 = vmatprep.subr.mxu0 0.0
    %1326 = vmatpush1.msra.mxu0 %v1321
    %1327 = vmatprep.subr.mxu0 0.0
    %1328 = vmatpush1.msra.mxu0 0.0
    %1329 = vmatprep.subr.mxu0 0.0
    %1330 = vmatpush1.msra.mxu0 0.0
    %1331 = vmatprep.subr.mxu0 0.0
    %1332 = vmatpush1.msra.mxu0 0.0
    %1333 = vmatprep.subr.mxu0 0.0
    %1334 = vmatpush1.msra.mxu0 0.0
    %1335 = vmatprep.subr.mxu0 0.0
    %1336 = vmatpush1.msra.mxu0 0.0
    %1337 = vmatprep.subr.mxu0 0.0
    %1338 = vmatpush1.msra.mxu0 0.0
    %1339 = vmatprep.subr.mxu0 0.0
    %1340 = vmatpush1.msra.mxu0 0.0
    %1341 = vmatprep.subr.mxu0 0.0
    %1342 = vmatpush1.msra.mxu0 0.0
    %1343 = vmatprep.subr.mxu0 0.0
    %1344 = vmatpush1.msra.mxu0 0.0
    %1345 = vmatprep.subr.mxu0 0.0
    %1346 = vmatpush1.msra.mxu0 0.0
    %1347 = vmatprep.subr.mxu0 0.0
    %1348 = vmatpush1.msra.mxu0 0.0
    %1349 = vmatprep.subr.mxu0 0.0
    %1350 = vmatpush1.msra.mxu0 0.0
    %1351 = vmatprep.subr.mxu0 0.0
    %1352 = vmatpush1.msra.mxu0 0.0
    %1353 = vmatprep.subr.mxu0 0.0
    %1354 = vmatpush1.msra.mxu0 0.0
    %1355 = vmatprep.subr.mxu0 0.0
    %1356 = vmatpush1.msra.mxu0 0.0
    %1357 = vmatprep.subr.mxu0 0.0
    %1358 = vmatpush1.msra.mxu0 0.0
    %1359 = vmatprep.subr.mxu0 0.0
    %1360 = vmatpush1.msra.mxu0 0.0
    %1361 = vmatprep.subr.mxu0 0.0
    %1362 = vmatpush1.msra.mxu0 0.0
    %1363 = vmatprep.subr.mxu0 0.0
    %1364 = vmatpush1.msra.mxu0 0.0
    %1365 = vmatprep.subr.mxu0 0.0
    %1366 = vmatpush1.msra.mxu0 0.0
    %1367 = vmatprep.subr.mxu0 0.0
    %1368 = vmatpush1.msra.mxu0 0.0
    %1369 = vmatprep.subr.mxu0 0.0
    %1370 = vmatpush1.msra.mxu0 0.0
    %1371 = vmatprep.subr.mxu0 0.0
    %1372 = vmatpush1.msra.mxu0 0.0
    %1373 = vmatprep.subr.mxu0 0.0
    %1374 = vmatpush1.msra.mxu0 0.0
    %1375 = vmatprep.subr.mxu0 0.0
    %1376 = vmatpush1.msra.mxu0 0.0
    %1377 = vmatprep.subr.mxu0 0.0
    %1378 = vmatpush1.msra.mxu0 0.0
    %1379 = vmatprep.subr.mxu0 0.0
    %1380 = vmatpush1.msra.mxu0 0.0
    %1381 = vmatprep.subr.mxu0 0.0
    %1382 = vmatpush1.msra.mxu0 0.0
    %1383 = vmatprep.subr.mxu0 0.0
    %1384 = vmatpush1.msra.mxu0 0.0
    %1385 = vmatprep.subr.mxu0 0.0
    %1386 = vmatpush1.msra.mxu0 0.0
    %1387 = vmatprep.mubr.f32.mxu0 0.0
    %1388 = vmatmul.mubr.f32.gmra.mrb[0].mxu0 %v1312
    %v1389 = vpop.f32.mrb[0].mxu0
    %v1390 = vadd.f32 0.0, %v1389
    %v1391 = vpop.f32.mrb[0].mxu0
    %1392 = vmatprep.mubr.f32.mxu0 0.0
    %1393 = vmatmul.mubr.f32.gmra.mrb[0].mxu0 %v1314
    %v1394 = vpop.f32.mrb[0].mxu0
    %v1395 = vadd.f32 0.0, %v1394
    %v1396 = vpop.f32.mrb[0].mxu0
    %1397 = vmatprep.mubr.f32.mxu0 0.0
    %1398 = vmatmul.mubr.f32.gmra.mrb[0].mxu0 %v1316
    %v1399 = vpop.f32.mrb[0].mxu0
    %v1400 = vadd.f32 0.0, %v1399
    %v1401 = vpop.f32.mrb[0].mxu0
    %1402 = vmatprep.mubr.f32.mxu0 0.0
    %1403 = vmatmul.mubr.f32.gmra.mrb[0].mxu0 %v1318
    %v1404 = vpop.f32.mrb[0].mxu0
    %v1405 = vadd.f32 0.0, %v1404
    %v1406 = vpop.f32.mrb[0].mxu0
    %1407 = vdwg.mxu0
    %1408 = vmatprep.subr.mxu0 0.0
    %1409 = vmatpush1.msra.mxu0 %v1297
    %1410 = vmatprep.subr.mxu0 0.0
    %1411 = vmatpush1.msra.mxu0 0.0
    %1412 = vmatprep.subr.mxu0 0.0
    %1413 = vmatpush1.msra.mxu0 0.0
    %1414 = vmatprep.subr.mxu0 0.0
    %1415 = vmatpush1.msra.mxu0 0.0
    %1416 = vmatprep.subr.mxu0 0.0
    %1417 = vmatpush1.msra.mxu0 0.0
    %1418 = vmatprep.subr.mxu0 0.0
    %1419 = vmatpush1.msra.mxu0 0.0
    %1420 = vmatprep.subr.mxu0 0.0
    %1421 = vmatpush1.msra.mxu0 0.0
    %1422 = vmatprep.subr.mxu0 0.0
    %1423 = vmatpush1.msra.mxu0 0.0
    %1424 = vmatprep.subr.mxu0 0.0
    %1425 = vmatpush1.msra.mxu0 0.0
    %1426 = vmatprep.subr.mxu0 0.0
    %1427 = vmatpush1.msra.mxu0 0.0
    %1428 = vmatprep.subr.mxu0 0.0
    %1429 = vmatpush1.msra.mxu0 0.0
    %1430 = vmatprep.subr.mxu0 0.0
    %1431 = vmatpush1.msra.mxu0 0.0
    %1432 = vmatprep.subr.mxu0 0.0
    %1433 = vmatpush1.msra.mxu0 0.0
    %1434 = vmatprep.subr.mxu0 0.0
    %1435 = vmatpush1.msra.mxu0 0.0
    %1436 = vmatprep.subr.mxu0 0.0
    %1437 = vmatpush1.msra.mxu0 0.0
    %1438 = vmatprep.subr.mxu0 0.0
    %1439 = vmatpush1.msra.mxu0 0.0
    %1440 = vmatprep.subr.mxu0 0.0
    %1441 = vmatpush1.msra.mxu0 0.0
    %1442 = vmatprep.subr.mxu0 0.0
    %1443 = vmatpush1.msra.mxu0 0.0
    %1444 = vmatprep.subr.mxu0 0.0
    %1445 = vmatpush1.msra.mxu0 0.0
    %1446 = vmatprep.subr.mxu0 0.0
    %1447 = vmatpush1.msra.mxu0 0.0
    %1448 = vmatprep.subr.mxu0 0.0
    %1449 = vmatpush1.msra.mxu0 0.0
    %1450 = vmatprep.subr.mxu0 0.0
    %1451 = vmatpush1.msra.mxu0 0.0
    %1452 = vmatprep.subr.mxu0 0.0
    %1453 = vmatpush1.msra.mxu0 0.0
    %1454 = vmatprep.subr.mxu0 0.0
    %1455 = vmatpush1.msra.mxu0 0.0
    %1456 = vmatprep.subr.mxu0 0.0
    %1457 = vmatpush1.msra.mxu0 0.0
    %1458 = vmatprep.subr.mxu0 0.0
    %1459 = vmatpush1.msra.mxu0 0.0
    %1460 = vmatprep.subr.mxu0 0.0
    %1461 = vmatpush1.msra.mxu0 0.0
    %1462 = vmatprep.subr.mxu0 0.0
    %1463 = vmatpush1.msra.mxu0 0.0
    %1464 = vmatprep.subr.mxu0 0.0
    %1465 = vmatpush1.msra.mxu0 0.0
    %1466 = vmatprep.subr.mxu0 0.0
    %1467 = vmatpush1.msra.mxu0 0.0
    %1468 = vmatprep.subr.mxu0 0.0
    %1469 = vmatpush1.msra.mxu0 0.0
    %1470 = vmatprep.subr.mxu0 0.0
    %1471 = vmatpush1.msra.mxu0 0.0
    %1472 = vmatprep.mubr.f32.mxu0 0.0
    %1473 = vmatmul.mubr.f32.gmra.mrb[0].mxu0 %v154
    %v1474 = vpop.f32.mrb[0].mxu0
    %v1475 = vadd.f32 %v1390, %v1474
    %v1476 = vpop.f32.mrb[0].mxu0
    %1477 = vmatprep.mubr.f32.mxu0 0.0
    %1478 = vmatmul.mubr.f32.gmra.mrb[0].mxu0 %v157
    %v1479 = vpop.f32.mrb[0].mxu0
    %v1480 = vadd.f32 %v1395, %v1479
    %v1481 = vpop.f32.mrb[0].mxu0
    %1482 = vmatprep.mubr.f32.mxu0 0.0
    %1483 = vmatmul.mubr.f32.gmra.mrb[0].mxu0 %v160
    %v1484 = vpop.f32.mrb[0].mxu0
    %v1485 = vadd.f32 %v1400, %v1484
    %v1486 = vpop.f32.mrb[0].mxu0
    %1487 = vmatprep.mubr.f32.mxu0 0.0
    %1488 = vmatmul.mubr.f32.gmra.mrb[0].mxu0 %v163
    %v1489 = vpop.f32.mrb[0].mxu0
    %v1490 = vadd.f32 %v1405, %v1489
    %v1491 = vpop.f32.mrb[0].mxu0
    %1492 = vdwg.mxu0
    %v1493 = vlaneseq
    %v1494 = vshrl.u32 %v1493, 7
    %v1495 = vsub.s32 0, %v1494
    %v1496 = vrot.slane %v144, %v1495
    %v1497 = vadd.f32 %v1475, %v1496
    %v1498 = vadd.f32 %v1480, %v1496
    %v1499 = vadd.f32 %v1485, %v1496
    %v1500 = vadd.f32 %v1490, %v1496
    %v1501 = vtanh.pop %v1497
    %v1502 = vtanh.pop %v1498
    %v1503 = vtanh.pop %v1499
    %v1504 = vtanh.pop %v1500
    %v1505 = vld [vmem:[#allocation11] sm:$0xff]
    %v1506 = vld [vmem:[#allocation11 + $0x8] sm:$0xff]
    %v1507 = vld [vmem:[#allocation11 + $0x10] sm:$0xff]
    %v1508 = vld [vmem:[#allocation11 + $0x18] sm:$0xff]
    %v1509 = vlaneseq
    %v1510 = vshrl.u32 %v1509, 7
    %v1511 = vsub.s32 0, %v1510
    %v1512 = vrot.slane %v145, %v1511
    %v1514 = vsel %vm262, %v1501, 0
    %v1517 = vsel %vm262, %v1502, 0
    %v1520 = vsel %vm262, %v1503, 0
    %v1523 = vsel %vm262, %v1504, 0
    %1525 = vmatprep.subr.mxu0 0.0
    %1526 = vmatpush1.msra.mxu0 %v1505
    %1527 = vmatprep.subr.mxu0 0.0
    %1528 = vmatpush1.msra.mxu0 %v1506
    %1529 = vmatprep.subr.mxu0 0.0
    %1530 = vmatpush1.msra.mxu0 %v1507
    %1531 = vmatprep.subr.mxu0 0.0
    %1532 = vmatpush1.msra.mxu0 %v1508
    %1533 = vmatprep.subr.mxu0 0.0
    %1534 = vmatpush1.msra.mxu0 0.0
    %1535 = vmatprep.subr.mxu0 0.0
    %1536 = vmatpush1.msra.mxu0 0.0
    %1537 = vmatprep.subr.mxu0 0.0
    %1538 = vmatpush1.msra.mxu0 0.0
    %1539 = vmatprep.subr.mxu0 0.0
    %1540 = vmatpush1.msra.mxu0 0.0
    %1541 = vmatprep.subr.mxu0 0.0
    %1542 = vmatpush1.msra.mxu0 0.0
    %1543 = vmatprep.subr.mxu0 0.0
    %1544 = vmatpush1.msra.mxu0 0.0
    %1545 = vmatprep.subr.mxu0 0.0
    %1546 = vmatpush1.msra.mxu0 0.0
    %1547 = vmatprep.subr.mxu0 0.0
    %1548 = vmatpush1.msra.mxu0 0.0
    %1549 = vmatprep.subr.mxu0 0.0
    %1550 = vmatpush1.msra.mxu0 0.0
    %1551 = vmatprep.subr.mxu0 0.0
    %1552 = vmatpush1.msra.mxu0 0.0
    %1553 = vmatprep.subr.mxu0 0.0
    %1554 = vmatpush1.msra.mxu0 0.0
    %1555 = vmatprep.subr.mxu0 0.0
    %1556 = vmatpush1.msra.mxu0 0.0
    %1557 = vmatprep.subr.mxu0 0.0
    %1558 = vmatpush1.msra.mxu0 0.0
    %1559 = vmatprep.subr.mxu0 0.0
    %1560 = vmatpush1.msra.mxu0 0.0
    %1561 = vmatprep.subr.mxu0 0.0
    %1562 = vmatpush1.msra.mxu0 0.0
    %1563 = vmatprep.subr.mxu0 0.0
    %1564 = vmatpush1.msra.mxu0 0.0
    %1565 = vmatprep.subr.mxu0 0.0
    %1566 = vmatpush1.msra.mxu0 0.0
    %1567 = vmatprep.subr.mxu0 0.0
    %1568 = vmatpush1.msra.mxu0 0.0
    %1569 = vmatprep.subr.mxu0 0.0
    %1570 = vmatpush1.msra.mxu0 0.0
    %1571 = vmatprep.subr.mxu0 0.0
    %1572 = vmatpush1.msra.mxu0 0.0
    %1573 = vmatprep.subr.mxu0 0.0
    %1574 = vmatpush1.msra.mxu0 0.0
    %1575 = vmatprep.subr.mxu0 0.0
    %1576 = vmatpush1.msra.mxu0 0.0
    %1577 = vmatprep.subr.mxu0 0.0
    %1578 = vmatpush1.msra.mxu0 0.0
    %1579 = vmatprep.subr.mxu0 0.0
    %1580 = vmatpush1.msra.mxu0 0.0
    %1581 = vmatprep.subr.mxu0 0.0
    %1582 = vmatpush1.msra.mxu0 0.0
    %1583 = vmatprep.subr.mxu0 0.0
    %1584 = vmatpush1.msra.mxu0 0.0
    %1585 = vmatprep.subr.mxu0 0.0
    %1586 = vmatpush1.msra.mxu0 0.0
    %1587 = vmatprep.subr.mxu0 0.0
    %1588 = vmatpush1.msra.mxu0 0.0
    %1589 = vmatprep.mubr.f32.mxu0 0.0
    %1590 = vmatmul.mubr.f32.gmra.mrb[0].mxu0 %v1514
    %v1591 = vpop.f32.mrb[0].mxu0
    %v1592 = vadd.f32 %v1512, %v1591
    %v1593 = vpop.f32.mrb[0].mxu0
    %1594 = vmatprep.mubr.f32.mxu0 0.0
    %1595 = vmatmul.mubr.f32.gmra.mrb[0].mxu0 %v1517
    %v1596 = vpop.f32.mrb[0].mxu0
    %v1597 = vadd.f32 %v1512, %v1596
    %v1598 = vpop.f32.mrb[0].mxu0
    %1599 = vmatprep.mubr.f32.mxu0 0.0
    %1600 = vmatmul.mubr.f32.gmra.mrb[0].mxu0 %v1520
    %v1601 = vpop.f32.mrb[0].mxu0
    %v1602 = vadd.f32 %v1512, %v1601
    %v1603 = vpop.f32.mrb[0].mxu0
    %1604 = vmatprep.mubr.f32.mxu0 0.0
    %1605 = vmatmul.mubr.f32.gmra.mrb[0].mxu0 %v1523
    %v1606 = vpop.f32.mrb[0].mxu0
    %v1607 = vadd.f32 %v1512, %v1606
    %v1608 = vpop.f32.mrb[0].mxu0
    %1609 = vdwg.mxu0
    %v1610 = vtanh.pop %v1592
    %v1611 = vtanh.pop %v1597
    %v1612 = vtanh.pop %v1602
    %v1613 = vtanh.pop %v1607
    %v1614 = vld [vmem:[#allocation13] sm:$0xff]
    %v1615 = vld [vmem:[#allocation13 + $0x8] sm:$0xff]
    %v1616 = vld [vmem:[#allocation13 + $0x10] sm:$0xff]
    %v1617 = vld [vmem:[#allocation13 + $0x18] sm:$0xff]
    %v1618 = vlaneseq
    %v1619 = vshrl.u32 %v1618, 7
    %v1620 = vsub.s32 0, %v1619
    %v1621 = vrot.slane %v146, %v1620
    %v1623 = vsel %vm262, %v1610, 0
    %v1626 = vsel %vm262, %v1611, 0
    %v1629 = vsel %vm262, %v1612, 0
    %v1632 = vsel %vm262, %v1613, 0
    %1634 = vmatprep.subr.mxu0 0.0
    %1635 = vmatpush1.msra.mxu0 %v1614
    %1636 = vmatprep.subr.mxu0 0.0
    %1637 = vmatpush1.msra.mxu0 %v1615
    %1638 = vmatprep.subr.mxu0 0.0
    %1639 = vmatpush1.msra.mxu0 %v1616
    %1640 = vmatprep.subr.mxu0 0.0
    %1641 = vmatpush1.msra.mxu0 %v1617
    %1642 = vmatprep.subr.mxu0 0.0
    %1643 = vmatpush1.msra.mxu0 0.0
    %1644 = vmatprep.subr.mxu0 0.0
    %1645 = vmatpush1.msra.mxu0 0.0
    %1646 = vmatprep.subr.mxu0 0.0
    %1647 = vmatpush1.msra.mxu0 0.0
    %1648 = vmatprep.subr.mxu0 0.0
    %1649 = vmatpush1.msra.mxu0 0.0
    %1650 = vmatprep.subr.mxu0 0.0
    %1651 = vmatpush1.msra.mxu0 0.0
    %1652 = vmatprep.subr.mxu0 0.0
    %1653 = vmatpush1.msra.mxu0 0.0
    %1654 = vmatprep.subr.mxu0 0.0
    %1655 = vmatpush1.msra.mxu0 0.0
    %1656 = vmatprep.subr.mxu0 0.0
    %1657 = vmatpush1.msra.mxu0 0.0
    %1658 = vmatprep.subr.mxu0 0.0
    %1659 = vmatpush1.msra.mxu0 0.0
    %1660 = vmatprep.subr.mxu0 0.0
    %1661 = vmatpush1.msra.mxu0 0.0
    %1662 = vmatprep.subr.mxu0 0.0
    %1663 = vmatpush1.msra.mxu0 0.0
    %1664 = vmatprep.subr.mxu0 0.0
    %1665 = vmatpush1.msra.mxu0 0.0
    %1666 = vmatprep.subr.mxu0 0.0
    %1667 = vmatpush1.msra.mxu0 0.0
    %1668 = vmatprep.subr.mxu0 0.0
    %1669 = vmatpush1.msra.mxu0 0.0
    %1670 = vmatprep.subr.mxu0 0.0
    %1671 = vmatpush1.msra.mxu0 0.0
    %1672 = vmatprep.subr.mxu0 0.0
    %1673 = vmatpush1.msra.mxu0 0.0
    %1674 = vmatprep.subr.mxu0 0.0
    %1675 = vmatpush1.msra.mxu0 0.0
    %1676 = vmatprep.subr.mxu0 0.0
    %1677 = vmatpush1.msra.mxu0 0.0
    %1678 = vmatprep.subr.mxu0 0.0
    %1679 = vmatpush1.msra.mxu0 0.0
    %1680 = vmatprep.subr.mxu0 0.0
    %1681 = vmatpush1.msra.mxu0 0.0
    %1682 = vmatprep.subr.mxu0 0.0
    %1683 = vmatpush1.msra.mxu0 0.0
    %1684 = vmatprep.subr.mxu0 0.0
    %1685 = vmatpush1.msra.mxu0 0.0
    %1686 = vmatprep.subr.mxu0 0.0
    %1687 = vmatpush1.msra.mxu0 0.0
    %1688 = vmatprep.subr.mxu0 0.0
    %1689 = vmatpush1.msra.mxu0 0.0
    %1690 = vmatprep.subr.mxu0 0.0
    %1691 = vmatpush1.msra.mxu0 0.0
    %1692 = vmatprep.subr.mxu0 0.0
    %1693 = vmatpush1.msra.mxu0 0.0
    %1694 = vmatprep.subr.mxu0 0.0
    %1695 = vmatpush1.msra.mxu0 0.0
    %1696 = vmatprep.subr.mxu0 0.0
    %1697 = vmatpush1.msra.mxu0 0.0
    %1698 = vmatprep.mubr.f32.mxu0 0.0
    %1699 = vmatmul.mubr.f32.gmra.mrb[0].mxu0 %v1623
    %v1700 = vpop.f32.mrb[0].mxu0
    %v1701 = vadd.f32 %v1621, %v1700
    %v1702 = vpop.f32.mrb[0].mxu0
    %1703 = vmatprep.mubr.f32.mxu0 0.0
    %1704 = vmatmul.mubr.f32.gmra.mrb[0].mxu0 %v1626
    %v1705 = vpop.f32.mrb[0].mxu0
    %v1706 = vadd.f32 %v1621, %v1705
    %v1707 = vpop.f32.mrb[0].mxu0
    %1708 = vmatprep.mubr.f32.mxu0 0.0
    %1709 = vmatmul.mubr.f32.gmra.mrb[0].mxu0 %v1629
    %v1710 = vpop.f32.mrb[0].mxu0
    %v1711 = vadd.f32 %v1621, %v1710
    %v1712 = vpop.f32.mrb[0].mxu0
    %1713 = vmatprep.mubr.f32.mxu0 0.0
    %1714 = vmatmul.mubr.f32.gmra.mrb[0].mxu0 %v1632
    %v1715 = vpop.f32.mrb[0].mxu0
    %v1716 = vadd.f32 %v1621, %v1715
    %v1717 = vpop.f32.mrb[0].mxu0
    %1718 = vdwg.mxu0
    %v1719 = vtanh.pop %v1701
    %v1720 = vtanh.pop %v1706
    %v1721 = vtanh.pop %v1711
    %v1722 = vtanh.pop %v1716
    %1723 = vst [vmem:[#allocation14] sm:$0xff] %v1719
    %1724 = vst [vmem:[#allocation14 + $0x8] sm:$0xff] %v1720
    %1725 = vst [vmem:[#allocation14 + $0x10] sm:$0xff] %v1721
    %1726 = vst [vmem:[#allocation14 + $0x18] sm:$0xff] %v1722
    // Predicated region
    $region78: #{tpu_custom_call.1} parent=1 // pred_check
      _
    $region79: #{tpu_custom_call.1} parent=1 // pred_check_branch
      %1728 = sbr.rel (0) target = $region81
    $region80: #{tpu_custom_call.1} parent=1 // pred_region
      %s1730 = ssub.s32 512, 512
      %1731 = vsyncadd [#allocation4], %s1730
      %s1732 = sshll.u32 [#allocation14], 4
      %s1733 = int_to_ptr.vmem [resolvable:$true] %s1732
      %1738 = dma.vmem_to_hbm [thread:$0]  %s1733, 512, %s12, [#allocation4], 128, 128, 8
    $region81: #{tpu_custom_call.1} parent=1 // pred_fallthru
      _
    // Predicated region
    $region82: #{tpu_custom_call.1} parent=1 // pred_check
      _
    $region83: #{tpu_custom_call.1} parent=1 // pred_check_branch
      %1740 = sbr.rel (0) target = $region85
    $region84: #{tpu_custom_call.1} parent=1 // pred_region
      %1741 = dma.done [#allocation4], 512
    $region85: #{tpu_custom_call.1} parent=1 // pred_fallthru
      _
    %1742 = vsyncpa [#allocation3], 1
    %1743 = vsyncpa [#allocation6], 1
    %1744 = vsyncpa [#allocation9], 1
    %1745 = vsyncpa [#allocation12], 1
    %1746 = vsyncpa [#allocation4], 1

</llo_original>
